<compile_context>
chip_gen: v6e
topology: v6e:2x2x1
jax: 0.10.0
libtpu: 0.0.40
codegen_flags: <defaults>
</compile_context>

<pallas_src>
import jax
import jax.numpy as jnp
from jax.experimental import pallas as pl
from jax.experimental.pallas import tpu as pltpu

X_IN = 64        # input feature size
H = 400          # hidden size of fc1 / fc3 (model definition)
H_PAD = 512      # lane-aligned hidden size used inside the kernel
Z = 20           # latent size
OUT_W = 128      # lane-dense output slab width: recon(64) | mu(20) | logvar(20) | pad(24)
TB = 128         # batch tile (rows per grid step)


def vae_kernel(x_ref, eps_ref,
               w1_ref, b1_ref,
               wmv_ref, bmv_ref,
               w3_ref, b3_ref,
               w4_ref, b4_ref,
               out_ref):
    # ---- encode ----
    h1 = jnp.dot(x_ref[...], w1_ref[...],
                 preferred_element_type=jnp.float32) + b1_ref[...]
    h1 = jnp.maximum(h1, 0.0)                                    # ReLU

    # fused mu || logvar projection: one (H_PAD, 2Z) matmul
    mulv = jnp.dot(h1.astype(jnp.bfloat16), wmv_ref[...],
                   preferred_element_type=jnp.float32) + bmv_ref[...]
    mu = mulv[:, :Z]
    logvar = mulv[:, Z:]

    # ---- reparameterize (training path, eps supplied from outside) ----
    z = mu + eps_ref[...] * jnp.exp(0.5 * logvar)

    # ---- decode ----
    h3 = jnp.dot(z.astype(jnp.bfloat16), w3_ref[...],
                 preferred_element_type=jnp.float32) + b3_ref[...]
    h3 = jnp.maximum(h3, 0.0)                                    # ReLU
    logits = jnp.dot(h3.astype(jnp.bfloat16), w4_ref[...],
                     preferred_element_type=jnp.float32) + b4_ref[...]
    recon = jax.nn.sigmoid(logits)

    # single lane-dense (TB, 128) store: [recon | mu | logvar | zeros]
    pad = jnp.zeros((recon.shape[0], OUT_W - X_IN - 2 * Z), jnp.float32)
    out_ref[...] = jnp.concatenate([recon, mulv, pad], axis=-1)


def _prep_weights(params):
    """Pad H=400->512, fuse fc21/fc22, cast matmul operands to bf16 (once)."""
    (w1, b1, w21, b21, w22, b22, w3, b3, w4, b4) = params
    w1p = jnp.zeros((X_IN, H_PAD), jnp.float32).at[:, :H].set(w1).astype(jnp.bfloat16)
    b1p = jnp.zeros((1, H_PAD), jnp.float32).at[:, :H].set(b1)
    wmv = (jnp.zeros((H_PAD, 2 * Z), jnp.float32)
           .at[:H, :Z].set(w21)
           .at[:H, Z:].set(w22)
           .astype(jnp.bfloat16))
    bmv = jnp.concatenate([b21, b22], axis=-1)                   # (1, 2Z) f32
    w3p = jnp.zeros((Z, H_PAD), jnp.float32).at[:, :H].set(w3).astype(jnp.bfloat16)
    b3p = jnp.zeros((1, H_PAD), jnp.float32).at[:, :H].set(b3)
    w4p = jnp.zeros((H_PAD, X_IN), jnp.float32).at[:H, :].set(w4).astype(jnp.bfloat16)
    return (w1p, b1p, wmv, bmv, w3p, b3p, w4p, b4)


@jax.jit
def vae_forward(x, eps, params):
    B = x.shape[0]
    b_pad = pl.cdiv(B, TB) * TB

    # pad batch to a multiple of the tile, cast x to bf16 (matmul operand)
    x_p = jnp.zeros((b_pad, X_IN), jnp.bfloat16).at[:B].set(x.astype(jnp.bfloat16))
    e_p = jnp.zeros((b_pad, Z), jnp.float32).at[:B].set(eps)
    weights = _prep_weights(params)

    def full_spec(a):
        return pl.BlockSpec(a.shape, lambda i, _nd=a.ndim: (0,) * _nd)

    in_specs = ([pl.BlockSpec((TB, X_IN), lambda i: (i, 0)),
                 pl.BlockSpec((TB, Z), lambda i: (i, 0))]
                + [full_spec(w) for w in weights])
    out_spec = pl.BlockSpec((TB, OUT_W), lambda i: (i, 0))

    out = pl.pallas_call(
        vae_kernel,
        out_shape=jax.ShapeDtypeStruct((b_pad, OUT_W), jnp.float32),
        grid=(b_pad // TB,),
        in_specs=in_specs,
        out_specs=out_spec,
        compiler_params=pltpu.CompilerParams(
            dimension_semantics=("parallel",)),   # splits batch tiles across TCs on v7x
    )(x_p, e_p, *weights)

    recon = out[:B, :X_IN]
    mu = out[:B, X_IN:X_IN + Z]
    logvar = out[:B, X_IN + Z:X_IN + 2 * Z]
    return recon, mu, logvar


def init_params(key):
    """Deterministic init mimicking nn.Linear's U(-1/sqrt(fan_in), 1/sqrt(fan_in)).
    Weights stored as (in_features, out_features), biases as (1, out)."""
    def linear(key, fan_in, fan_out):
        kw, kb = jax.random.split(key)
        bound = 1.0 / jnp.sqrt(fan_in)
        w = jax.random.uniform(kw, (fan_in, fan_out), jnp.float32, -bound, bound)
        b = jax.random.uniform(kb, (1, fan_out), jnp.float32, -bound, bound)
        return w, b

    k1, k21, k22, k3, k4 = jax.random.split(key, 5)
    w1, b1 = linear(k1, X_IN, H)
    w21, b21 = linear(k21, H, Z)
    w22, b22 = linear(k22, H, Z)
    w3, b3 = linear(k3, Z, H)
    w4, b4 = linear(k4, H, X_IN)
    return (w1, b1, w21, b21, w22, b22, w3, b3, w4, b4)


def vae_forward_ref(x, eps, params):
    """Pure-JAX f32 reference for correctness checking."""
    (w1, b1, w21, b21, w22, b22, w3, b3, w4, b4) = params
    h1 = jnp.maximum(x @ w1 + b1, 0.0)
    mu = h1 @ w21 + b21
    logvar = h1 @ w22 + b22
    z = mu + eps * jnp.exp(0.5 * logvar)
    h3 = jnp.maximum(z @ w3 + b3, 0.0)
    recon = jax.nn.sigmoid(h3 @ w4 + b4)
    return recon, mu, logvar


if __name__ == "__main__":
    key = jax.random.PRNGKey(0)
    k_params, k_x, k_eps = jax.random.split(key, 3)

    B = 256  # amortize the resident weights over 2 batch tiles of 128 rows
    params = init_params(k_params)
    x = jax.random.normal(k_x, (B, X_IN), jnp.float32)
    eps = jax.random.normal(k_eps, (B, Z), jnp.float32)   # reparameterization noise

    recon, mu, logvar = vae_forward(x, eps, params)
    jax.block_until_ready((recon, mu, logvar))

    # f32 reference; tolerance loosened because matmul operands run in bf16.
    r_ref, mu_ref, lv_ref = vae_forward_ref(x, eps, params)
    assert jnp.allclose(recon, r_ref, atol=3e-2, rtol=3e-2), "recon mismatch"
    assert jnp.allclose(mu, mu_ref, atol=3e-2, rtol=3e-2), "mu mismatch"
    assert jnp.allclose(logvar, lv_ref, atol=3e-2, rtol=3e-2), "logvar mismatch"

    print("KERNEL_OK")
</pallas_src>

<mosaic_0001>
module attributes {stable_mosaic.version = 11 : i64} {
  func.func @vae_kernel(%arg0: i32, %arg1: memref<128x64xbf16, #tpu.memory_space<vmem>>, %arg2: memref<128x20xf32, #tpu.memory_space<vmem>>, %arg3: memref<64x512xbf16, #tpu.memory_space<vmem>>, %arg4: memref<1x512xf32, #tpu.memory_space<vmem>>, %arg5: memref<512x40xbf16, #tpu.memory_space<vmem>>, %arg6: memref<1x40xf32, #tpu.memory_space<vmem>>, %arg7: memref<20x512xbf16, #tpu.memory_space<vmem>>, %arg8: memref<1x512xf32, #tpu.memory_space<vmem>>, %arg9: memref<512x64xbf16, #tpu.memory_space<vmem>>, %arg10: memref<1x64xf32, #tpu.memory_space<vmem>>, %arg11: memref<128x128xf32, #tpu.memory_space<vmem>>) attributes {dimension_semantics = [#tpu.dimension_semantics<parallel>], iteration_bounds = array<i64: 2>, scalar_prefetch = 0 : i64, scratch_operands = 0 : i64, tpu.core_type = #tpu.core_type<tc>, window_params = [{transform_indices = @transform_0, window_bounds = array<i64: 128, 64>}, {transform_indices = @transform_1, window_bounds = array<i64: 128, 20>}, {pipeline_mode = #tpu.pipeline_mode<synchronous>, transform_indices = @transform_2, window_bounds = array<i64: 64, 512>}, {pipeline_mode = #tpu.pipeline_mode<synchronous>, transform_indices = @transform_3, window_bounds = array<i64: 1, 512>}, {pipeline_mode = #tpu.pipeline_mode<synchronous>, transform_indices = @transform_4, window_bounds = array<i64: 512, 40>}, {pipeline_mode = #tpu.pipeline_mode<synchronous>, transform_indices = @transform_5, window_bounds = array<i64: 1, 40>}, {pipeline_mode = #tpu.pipeline_mode<synchronous>, transform_indices = @transform_6, window_bounds = array<i64: 20, 512>}, {pipeline_mode = #tpu.pipeline_mode<synchronous>, transform_indices = @transform_7, window_bounds = array<i64: 1, 512>}, {pipeline_mode = #tpu.pipeline_mode<synchronous>, transform_indices = @transform_8, window_bounds = array<i64: 512, 64>}, {pipeline_mode = #tpu.pipeline_mode<synchronous>, transform_indices = @transform_9, window_bounds = array<i64: 1, 64>}, {transform_indices = @transform_10, window_bounds = array<i64: 128, 128>}]} {
    %c0 = arith.constant 0 : index
    %c0_0 = arith.constant 0 : index
    %0 = vector.load %arg1[%c0, %c0_0] : memref<128x64xbf16, #tpu.memory_space<vmem>>, vector<128x64xbf16>
    %c0_1 = arith.constant 0 : index
    %c0_2 = arith.constant 0 : index
    %1 = vector.load %arg3[%c0_1, %c0_2] : memref<64x512xbf16, #tpu.memory_space<vmem>>, vector<64x512xbf16>
    %cst = arith.constant dense<0.000000e+00> : vector<128x512xf32>
    %2 = tpu.matmul %0, %1, %cst {dimension_numbers = #tpu.dot_dimension_numbers<[1], [0], [0], [1], [0, 0, 1, 1], [], []>} : vector<128x64xbf16>, vector<64x512xbf16>, vector<128x512xf32> -> vector<128x512xf32>
    %c0_3 = arith.constant 0 : index
    %c0_4 = arith.constant 0 : index
    %3 = vector.load %arg4[%c0_3, %c0_4] : memref<1x512xf32, #tpu.memory_space<vmem>>, vector<1x512xf32>
    %4 = vector.broadcast %3 : vector<1x512xf32> to vector<128x512xf32>
    %5 = arith.addf %2, %4 : vector<128x512xf32>
    %cst_5 = arith.constant 0.000000e+00 : f32
    %6 = vector.broadcast %cst_5 : f32 to vector<128x512xf32>
    %7 = arith.maximumf %5, %6 : vector<128x512xf32>
    %8 = arith.truncf %7 : vector<128x512xf32> to vector<128x512xbf16>
    %c0_6 = arith.constant 0 : index
    %c0_7 = arith.constant 0 : index
    %9 = vector.load %arg5[%c0_6, %c0_7] : memref<512x40xbf16, #tpu.memory_space<vmem>>, vector<512x40xbf16>
    %cst_8 = arith.constant dense<0.000000e+00> : vector<128x40xf32>
    %10 = tpu.matmul %8, %9, %cst_8 {dimension_numbers = #tpu.dot_dimension_numbers<[1], [0], [0], [1], [0, 0, 1, 1], [], []>} : vector<128x512xbf16>, vector<512x40xbf16>, vector<128x40xf32> -> vector<128x40xf32>
    %c0_9 = arith.constant 0 : index
    %c0_10 = arith.constant 0 : index
    %11 = vector.load %arg6[%c0_9, %c0_10] : memref<1x40xf32, #tpu.memory_space<vmem>>, vector<1x40xf32>
    %12 = vector.broadcast %11 : vector<1x40xf32> to vector<128x40xf32>
    %13 = arith.addf %10, %12 : vector<128x40xf32>
    %14 = vector.extract_strided_slice %13 {offsets = [0, 0], sizes = [128, 20], strides = [1, 1]} : vector<128x40xf32> to vector<128x20xf32>
    %15 = vector.extract_strided_slice %13 {offsets = [0, 20], sizes = [128, 20], strides = [1, 1]} : vector<128x40xf32> to vector<128x20xf32>
    %c0_11 = arith.constant 0 : index
    %c0_12 = arith.constant 0 : index
    %16 = vector.load %arg2[%c0_11, %c0_12] : memref<128x20xf32, #tpu.memory_space<vmem>>, vector<128x20xf32>
    %cst_13 = arith.constant 5.000000e-01 : f32
    %17 = vector.broadcast %cst_13 : f32 to vector<128x20xf32>
    %18 = arith.mulf %17, %15 : vector<128x20xf32>
    %19 = math.exp %18 : vector<128x20xf32>
    %20 = arith.mulf %16, %19 : vector<128x20xf32>
    %21 = arith.addf %14, %20 : vector<128x20xf32>
    %22 = arith.truncf %21 : vector<128x20xf32> to vector<128x20xbf16>
    %c0_14 = arith.constant 0 : index
    %c0_15 = arith.constant 0 : index
    %23 = vector.load %arg7[%c0_14, %c0_15] : memref<20x512xbf16, #tpu.memory_space<vmem>>, vector<20x512xbf16>
    %cst_16 = arith.constant dense<0.000000e+00> : vector<128x512xf32>
    %24 = tpu.matmul %22, %23, %cst_16 {dimension_numbers = #tpu.dot_dimension_numbers<[1], [0], [0], [1], [0, 0, 1, 1], [], []>} : vector<128x20xbf16>, vector<20x512xbf16>, vector<128x512xf32> -> vector<128x512xf32>
    %c0_17 = arith.constant 0 : index
    %c0_18 = arith.constant 0 : index
    %25 = vector.load %arg8[%c0_17, %c0_18] : memref<1x512xf32, #tpu.memory_space<vmem>>, vector<1x512xf32>
    %26 = vector.broadcast %25 : vector<1x512xf32> to vector<128x512xf32>
    %27 = arith.addf %24, %26 : vector<128x512xf32>
    %cst_19 = arith.constant 0.000000e+00 : f32
    %28 = vector.broadcast %cst_19 : f32 to vector<128x512xf32>
    %29 = arith.maximumf %27, %28 : vector<128x512xf32>
    %30 = arith.truncf %29 : vector<128x512xf32> to vector<128x512xbf16>
    %c0_20 = arith.constant 0 : index
    %c0_21 = arith.constant 0 : index
    %31 = vector.load %arg9[%c0_20, %c0_21] : memref<512x64xbf16, #tpu.memory_space<vmem>>, vector<512x64xbf16>
    %cst_22 = arith.constant dense<0.000000e+00> : vector<128x64xf32>
    %32 = tpu.matmul %30, %31, %cst_22 {dimension_numbers = #tpu.dot_dimension_numbers<[1], [0], [0], [1], [0, 0, 1, 1], [], []>} : vector<128x512xbf16>, vector<512x64xbf16>, vector<128x64xf32> -> vector<128x64xf32>
    %c0_23 = arith.constant 0 : index
    %c0_24 = arith.constant 0 : index
    %33 = vector.load %arg10[%c0_23, %c0_24] : memref<1x64xf32, #tpu.memory_space<vmem>>, vector<1x64xf32>
    %34 = vector.broadcast %33 : vector<1x64xf32> to vector<128x64xf32>
    %35 = arith.addf %32, %34 : vector<128x64xf32>
    %36 = arith.negf %35 : vector<128x64xf32>
    %37 = math.exp %36 : vector<128x64xf32>
    %cst_25 = arith.constant 1.000000e+00 : f32
    %38 = vector.broadcast %cst_25 : f32 to vector<128x64xf32>
    %39 = arith.addf %38, %37 : vector<128x64xf32>
    %40 = arith.divf %38, %39 : vector<128x64xf32>
    %cst_26 = arith.constant 0.000000e+00 : f32
    %41 = vector.broadcast %cst_26 : f32 to vector<128x24xf32>
    %42 = tpu.concatenate %40, %13, %41 in 1 : vector<128x64xf32>, vector<128x40xf32>, vector<128x24xf32> -> vector<128x128xf32>
    %c0_27 = arith.constant 0 : index
    %c0_28 = arith.constant 0 : index
    %43 = vector.load %arg11[%c0_27, %c0_28] : memref<128x128xf32, #tpu.memory_space<vmem>>, vector<128x128xf32>
    tpu.vector_store %arg11[%c0_27, %c0_28], %42 {strides = array<i32>} : memref<128x128xf32, #tpu.memory_space<vmem>>, vector<128x128xf32>,
    return
  }
  func.func @transform_0(%arg0: i32) -> (i32, i32) {
    %c0_i32 = arith.constant 0 : i32
    %c0_i32_0 = arith.constant 0 : i32
    return %arg0, %c0_i32 : i32, i32
  }
  func.func @transform_1(%arg0: i32) -> (i32, i32) {
    %c0_i32 = arith.constant 0 : i32
    %c0_i32_0 = arith.constant 0 : i32
    return %arg0, %c0_i32 : i32, i32
  }
  func.func @transform_2(%arg0: i32) -> (i32, i32) {
    %c0_i32 = arith.constant 0 : i32
    %c0_i32_0 = arith.constant 0 : i32
    %c0_i32_1 = arith.constant 0 : i32
    return %c0_i32, %c0_i32_0 : i32, i32
  }
  func.func @transform_3(%arg0: i32) -> (i32, i32) {
    %c0_i32 = arith.constant 0 : i32
    %c0_i32_0 = arith.constant 0 : i32
    %c0_i32_1 = arith.constant 0 : i32
    return %c0_i32, %c0_i32_0 : i32, i32
  }
  func.func @transform_4(%arg0: i32) -> (i32, i32) {
    %c0_i32 = arith.constant 0 : i32
    %c0_i32_0 = arith.constant 0 : i32
    %c0_i32_1 = arith.constant 0 : i32
    return %c0_i32, %c0_i32_0 : i32, i32
  }
  func.func @transform_5(%arg0: i32) -> (i32, i32) {
    %c0_i32 = arith.constant 0 : i32
    %c0_i32_0 = arith.constant 0 : i32
    %c0_i32_1 = arith.constant 0 : i32
    return %c0_i32, %c0_i32_0 : i32, i32
  }
  func.func @transform_6(%arg0: i32) -> (i32, i32) {
    %c0_i32 = arith.constant 0 : i32
    %c0_i32_0 = arith.constant 0 : i32
    %c0_i32_1 = arith.constant 0 : i32
    return %c0_i32, %c0_i32_0 : i32, i32
  }
  func.func @transform_7(%arg0: i32) -> (i32, i32) {
    %c0_i32 = arith.constant 0 : i32
    %c0_i32_0 = arith.constant 0 : i32
    %c0_i32_1 = arith.constant 0 : i32
    return %c0_i32, %c0_i32_0 : i32, i32
  }
  func.func @transform_8(%arg0: i32) -> (i32, i32) {
    %c0_i32 = arith.constant 0 : i32
    %c0_i32_0 = arith.constant 0 : i32
    %c0_i32_1 = arith.constant 0 : i32
    return %c0_i32, %c0_i32_0 : i32, i32
  }
  func.func @transform_9(%arg0: i32) -> (i32, i32) {
    %c0_i32 = arith.constant 0 : i32
    %c0_i32_0 = arith.constant 0 : i32
    %c0_i32_1 = arith.constant 0 : i32
    return %c0_i32, %c0_i32_0 : i32, i32
  }
  func.func @transform_10(%arg0: i32) -> (i32, i32) {
    %c0_i32 = arith.constant 0 : i32
    %c0_i32_0 = arith.constant 0 : i32
    return %arg0, %c0_i32 : i32, i32
  }
}

</mosaic_0001>

<llo_original>
// kernel: vae_forward.1
$region0: #{vae_forward.1}
  #allocation0 [shape = 'u32[]', space=smem, size = 0x4, offset = 0x4, fixed_abs, tag = 'smem constant byte address 0x4 - core index']
  #allocation1 [shape = 'u32[144,128]{1,0:T(1,128)}', space=vmem, size = 0x12000, scoped, tag = 'internal scratch']
  %s0 = inlined_call_operand.vmem [shape: bf16[256,64], index: 0, kind: input, shape index: {}]
  %s1 = inlined_call_operand.vmem [shape: f32[256,20], index: 1, kind: input, shape index: {}]
  %s2 = inlined_call_operand.vmem [shape: bf16[64,512], index: 2, kind: input, shape index: {}]
  %s3 = inlined_call_operand.vmem [shape: f32[1,512], index: 3, kind: input, shape index: {}]
  %s4 = inlined_call_operand.vmem [shape: bf16[512,40], index: 4, kind: input, shape index: {}]
  %s5 = inlined_call_operand.vmem [shape: f32[1,40], index: 5, kind: input, shape index: {}]
  %s6 = inlined_call_operand.vmem [shape: bf16[20,512], index: 6, kind: input, shape index: {}]
  %s7 = inlined_call_operand.vmem [shape: f32[1,512], index: 7, kind: input, shape index: {}]
  %s8 = inlined_call_operand.vmem [shape: bf16[512,64], index: 8, kind: input, shape index: {}]
  %s9 = inlined_call_operand.vmem [shape: f32[1,64], index: 9, kind: input, shape index: {}]
  %s10 = inlined_call_operand.vmem [shape: f32[256,128], index: 10, kind: output, shape index: {}]
  %s11 = sld [smem:[#allocation0]]
  $region73: #{vae_forward.1} parent=0
    _
  %s13 = ssub.s32 1, %s11
  %s14 = scalar_select 0, %s13, %s11
  loop: start=0, step=1, limit=4
  $region2: #{vae_forward.1} parent=0 // loop_pre_header
    _
  $region3: #{vae_forward.1} parent=0 // loop_header
    %s16 = sphi 0, %s20
    %p17 = scmp.ge.s32.totalorder %s16, 4
    %s26 = sphi 0, %s28
    %s29 = sphi 0, %s26
    %s30 = sphi 0, %s29
    %s46 = sphi 0, %s30
    %s52 = sphi 0, %s54
    %s55 = sphi 0, %s52
    %s56 = sphi 0, %s55
    %s72 = sphi 0, %s56
    %s76 = sphi 0, %s76
    %s78 = sphi 0, %s76
    %s79 = sphi 0, %s78
    %s93 = sphi 0, %s79
    %s97 = sphi 0, %s97
    %s99 = sphi 0, %s97
    %s100 = sphi 0, %s99
    %s114 = sphi 0, %s100
    %s118 = sphi 0, %s118
    %s120 = sphi 0, %s118
    %s121 = sphi 0, %s120
    %s135 = sphi 0, %s121
    %s139 = sphi 0, %s139
    %s141 = sphi 0, %s139
    %s142 = sphi 0, %s141
    %s156 = sphi 0, %s142
    %s160 = sphi 0, %s160
    %s162 = sphi 0, %s160
    %s163 = sphi 0, %s162
    %s177 = sphi 0, %s163
    %s181 = sphi 0, %s181
    %s183 = sphi 0, %s181
    %s184 = sphi 0, %s183
    %s198 = sphi 0, %s184
    %s202 = sphi 0, %s202
    %s204 = sphi 0, %s202
    %s205 = sphi 0, %s204
    %s219 = sphi 0, %s205
    %s223 = sphi 0, %s223
    %s225 = sphi 0, %s223
    %s226 = sphi 0, %s225
    %s240 = sphi 0, %s226
    %s246 = sphi 0, %s248
    %s249 = sphi 0, %s246
    %s250 = sphi 0, %s249
    %s266 = sphi 0, %s250
  $region4: #{vae_forward.1} parent=0 // loop_header_branch
    %19 = sbr.rel (%p17) target = $region8
  $region5: #{vae_forward.1} parent=0 // loop_body
    %s21 = ssub.s32 %s16, 1
    %s22 = ssub.s32 %s16, 2
    %s23 = sadd.s32 %s16, 1
    %s24 = ssub.s32 %s16, %s23
    %p25 = scmp.eq.s32.totalorder %s24, 0
    %s27 = sadd.s32 %s26, 1
    %s28 = scalar_select %p25, %s26, %s27
    %p31 = pneg %p25
    %p32 = scmp.eq.s32.totalorder %s16, 1
    %p33 = por %p31, %p32
    %p34 = scmp.ne.s32.totalorder %s26, %s29
    %p35 = scmp.eq.s32.totalorder %s16, 0
    %p36 = por %p34, %p35
    %p37 = scmp.ne.s32.totalorder %s26, %s29
    %p38 = scmp.eq.s32.totalorder %s21, 1
    %p39 = por %p37, %p38
    %p40 = scmp.ne.s32.totalorder %s29, %s30
    %p41 = scmp.eq.s32.totalorder %s21, 0
    %p42 = por %p40, %p41
    %p43 = scmp.ne.s32.totalorder %s29, %s30
    %p44 = scmp.eq.s32.totalorder %s22, 1
    %p45 = por %p43, %p44
    %p47 = scmp.ne.s32.totalorder %s30, %s46
    %p48 = scmp.eq.s32.totalorder %s22, 0
    %p49 = por %p47, %p48
    %s50 = ssub.s32 %s16, %s23
    %p51 = scmp.eq.s32.totalorder %s50, 0
    %s53 = sadd.s32 %s52, 1
    %s54 = scalar_select %p51, %s52, %s53
    %p57 = pneg %p51
    %p58 = scmp.eq.s32.totalorder %s16, 1
    %p59 = por %p57, %p58
    %p60 = scmp.ne.s32.totalorder %s52, %s55
    %p61 = scmp.eq.s32.totalorder %s16, 0
    %p62 = por %p60, %p61
    %p63 = scmp.ne.s32.totalorder %s52, %s55
    %p64 = scmp.eq.s32.totalorder %s21, 1
    %p65 = por %p63, %p64
    %p66 = scmp.ne.s32.totalorder %s55, %s56
    %p67 = scmp.eq.s32.totalorder %s21, 0
    %p68 = por %p66, %p67
    %p69 = scmp.ne.s32.totalorder %s55, %s56
    %p70 = scmp.eq.s32.totalorder %s22, 1
    %p71 = por %p69, %p70
    %p73 = scmp.ne.s32.totalorder %s56, %s72
    %p74 = scmp.eq.s32.totalorder %s22, 0
    %p75 = por %p73, %p74
    %s77 = sadd.s32 %s76, 1
    %p80 = scmp.eq.s32.totalorder %s16, 1
    %p81 = scmp.ne.s32.totalorder %s76, %s78
    %p82 = scmp.eq.s32.totalorder %s16, 0
    %p83 = por %p81, %p82
    %p84 = scmp.ne.s32.totalorder %s76, %s78
    %p85 = scmp.eq.s32.totalorder %s21, 1
    %p86 = por %p84, %p85
    %p87 = scmp.ne.s32.totalorder %s78, %s79
    %p88 = scmp.eq.s32.totalorder %s21, 0
    %p89 = por %p87, %p88
    %p90 = scmp.ne.s32.totalorder %s78, %s79
    %p91 = scmp.eq.s32.totalorder %s22, 1
    %p92 = por %p90, %p91
    %p94 = scmp.ne.s32.totalorder %s79, %s93
    %p95 = scmp.eq.s32.totalorder %s22, 0
    %p96 = por %p94, %p95
    %s98 = sadd.s32 %s97, 1
    %p101 = scmp.eq.s32.totalorder %s16, 1
    %p102 = scmp.ne.s32.totalorder %s97, %s99
    %p103 = scmp.eq.s32.totalorder %s16, 0
    %p104 = por %p102, %p103
    %p105 = scmp.ne.s32.totalorder %s97, %s99
    %p106 = scmp.eq.s32.totalorder %s21, 1
    %p107 = por %p105, %p106
    %p108 = scmp.ne.s32.totalorder %s99, %s100
    %p109 = scmp.eq.s32.totalorder %s21, 0
    %p110 = por %p108, %p109
    %p111 = scmp.ne.s32.totalorder %s99, %s100
    %p112 = scmp.eq.s32.totalorder %s22, 1
    %p113 = por %p111, %p112
    %p115 = scmp.ne.s32.totalorder %s100, %s114
    %p116 = scmp.eq.s32.totalorder %s22, 0
    %p117 = por %p115, %p116
    %s119 = sadd.s32 %s118, 1
    %p122 = scmp.eq.s32.totalorder %s16, 1
    %p123 = scmp.ne.s32.totalorder %s118, %s120
    %p124 = scmp.eq.s32.totalorder %s16, 0
    %p125 = por %p123, %p124
    %p126 = scmp.ne.s32.totalorder %s118, %s120
    %p127 = scmp.eq.s32.totalorder %s21, 1
    %p128 = por %p126, %p127
    %p129 = scmp.ne.s32.totalorder %s120, %s121
    %p130 = scmp.eq.s32.totalorder %s21, 0
    %p131 = por %p129, %p130
    %p132 = scmp.ne.s32.totalorder %s120, %s121
    %p133 = scmp.eq.s32.totalorder %s22, 1
    %p134 = por %p132, %p133
    %p136 = scmp.ne.s32.totalorder %s121, %s135
    %p137 = scmp.eq.s32.totalorder %s22, 0
    %p138 = por %p136, %p137
    %s140 = sadd.s32 %s139, 1
    %p143 = scmp.eq.s32.totalorder %s16, 1
    %p144 = scmp.ne.s32.totalorder %s139, %s141
    %p145 = scmp.eq.s32.totalorder %s16, 0
    %p146 = por %p144, %p145
    %p147 = scmp.ne.s32.totalorder %s139, %s141
    %p148 = scmp.eq.s32.totalorder %s21, 1
    %p149 = por %p147, %p148
    %p150 = scmp.ne.s32.totalorder %s141, %s142
    %p151 = scmp.eq.s32.totalorder %s21, 0
    %p152 = por %p150, %p151
    %p153 = scmp.ne.s32.totalorder %s141, %s142
    %p154 = scmp.eq.s32.totalorder %s22, 1
    %p155 = por %p153, %p154
    %p157 = scmp.ne.s32.totalorder %s142, %s156
    %p158 = scmp.eq.s32.totalorder %s22, 0
    %p159 = por %p157, %p158
    %s161 = sadd.s32 %s160, 1
    %p164 = scmp.eq.s32.totalorder %s16, 1
    %p165 = scmp.ne.s32.totalorder %s160, %s162
    %p166 = scmp.eq.s32.totalorder %s16, 0
    %p167 = por %p165, %p166
    %p168 = scmp.ne.s32.totalorder %s160, %s162
    %p169 = scmp.eq.s32.totalorder %s21, 1
    %p170 = por %p168, %p169
    %p171 = scmp.ne.s32.totalorder %s162, %s163
    %p172 = scmp.eq.s32.totalorder %s21, 0
    %p173 = por %p171, %p172
    %p174 = scmp.ne.s32.totalorder %s162, %s163
    %p175 = scmp.eq.s32.totalorder %s22, 1
    %p176 = por %p174, %p175
    %p178 = scmp.ne.s32.totalorder %s163, %s177
    %p179 = scmp.eq.s32.totalorder %s22, 0
    %p180 = por %p178, %p179
    %s182 = sadd.s32 %s181, 1
    %p185 = scmp.eq.s32.totalorder %s16, 1
    %p186 = scmp.ne.s32.totalorder %s181, %s183
    %p187 = scmp.eq.s32.totalorder %s16, 0
    %p188 = por %p186, %p187
    %p189 = scmp.ne.s32.totalorder %s181, %s183
    %p190 = scmp.eq.s32.totalorder %s21, 1
    %p191 = por %p189, %p190
    %p192 = scmp.ne.s32.totalorder %s183, %s184
    %p193 = scmp.eq.s32.totalorder %s21, 0
    %p194 = por %p192, %p193
    %p195 = scmp.ne.s32.totalorder %s183, %s184
    %p196 = scmp.eq.s32.totalorder %s22, 1
    %p197 = por %p195, %p196
    %p199 = scmp.ne.s32.totalorder %s184, %s198
    %p200 = scmp.eq.s32.totalorder %s22, 0
    %p201 = por %p199, %p200
    %s203 = sadd.s32 %s202, 1
    %p206 = scmp.eq.s32.totalorder %s16, 1
    %p207 = scmp.ne.s32.totalorder %s202, %s204
    %p208 = scmp.eq.s32.totalorder %s16, 0
    %p209 = por %p207, %p208
    %p210 = scmp.ne.s32.totalorder %s202, %s204
    %p211 = scmp.eq.s32.totalorder %s21, 1
    %p212 = por %p210, %p211
    %p213 = scmp.ne.s32.totalorder %s204, %s205
    %p214 = scmp.eq.s32.totalorder %s21, 0
    %p215 = por %p213, %p214
    %p216 = scmp.ne.s32.totalorder %s204, %s205
    %p217 = scmp.eq.s32.totalorder %s22, 1
    %p218 = por %p216, %p217
    %p220 = scmp.ne.s32.totalorder %s205, %s219
    %p221 = scmp.eq.s32.totalorder %s22, 0
    %p222 = por %p220, %p221
    %s224 = sadd.s32 %s223, 1
    %p227 = scmp.eq.s32.totalorder %s16, 1
    %p228 = scmp.ne.s32.totalorder %s223, %s225
    %p229 = scmp.eq.s32.totalorder %s16, 0
    %p230 = por %p228, %p229
    %p231 = scmp.ne.s32.totalorder %s223, %s225
    %p232 = scmp.eq.s32.totalorder %s21, 1
    %p233 = por %p231, %p232
    %p234 = scmp.ne.s32.totalorder %s225, %s226
    %p235 = scmp.eq.s32.totalorder %s21, 0
    %p236 = por %p234, %p235
    %p237 = scmp.ne.s32.totalorder %s225, %s226
    %p238 = scmp.eq.s32.totalorder %s22, 1
    %p239 = por %p237, %p238
    %p241 = scmp.ne.s32.totalorder %s226, %s240
    %p242 = scmp.eq.s32.totalorder %s22, 0
    %p243 = por %p241, %p242
    %s244 = ssub.s32 %s16, %s23
    %p245 = scmp.eq.s32.totalorder %s244, 0
    %s247 = sadd.s32 %s246, 1
    %s248 = scalar_select %p245, %s246, %s247
    %p251 = pneg %p245
    %p252 = scmp.eq.s32.totalorder %s16, 1
    %p253 = por %p251, %p252
    %p254 = scmp.ne.s32.totalorder %s246, %s249
    %p255 = scmp.eq.s32.totalorder %s16, 0
    %p256 = por %p254, %p255
    %p257 = scmp.ne.s32.totalorder %s246, %s249
    %p258 = scmp.eq.s32.totalorder %s21, 1
    %p259 = por %p257, %p258
    %p260 = scmp.ne.s32.totalorder %s249, %s250
    %p261 = scmp.eq.s32.totalorder %s21, 0
    %p262 = por %p260, %p261
    %p263 = scmp.ne.s32.totalorder %s249, %s250
    %p264 = scmp.eq.s32.totalorder %s22, 1
    %p265 = por %p263, %p264
    %p267 = scmp.ne.s32.totalorder %s250, %s266
    %p268 = scmp.eq.s32.totalorder %s22, 0
    %p269 = por %p267, %p268
    %p270 = scmp.le.s32.totalorder 1, %s16
    %p271 = scmp.lt.s32.totalorder %s16, 3
    %p272 = pnand %p270, %p271
    %p273 = pneg %p272
    // Predicated region
    $region9: #{vae_forward.1} parent=5 // pred_check
      _
    $region10: #{vae_forward.1} parent=5 // pred_check_branch
      %275 = sbr.rel (%p272) target = $region12
    $region11: #{vae_forward.1} parent=5 // pred_region
      %s276 = ssub.s32 %s16, 1
      // Predicated region
      $region13: #{vae_forward.1} parent=11 // pred_check
        %p277 = pneg %p89
      $region14: #{vae_forward.1} parent=11 // pred_check_branch
        %279 = sbr.rel (%p277) target = $region16
      $region15: #{vae_forward.1} parent=11 // pred_region
        _
      $region16: #{vae_forward.1} parent=11 // pred_fallthru
        _
      // Predicated region
      $region17: #{vae_forward.1} parent=11 // pred_check
        %p280 = pneg %p110
      $region18: #{vae_forward.1} parent=11 // pred_check_branch
        %282 = sbr.rel (%p280) target = $region20
      $region19: #{vae_forward.1} parent=11 // pred_region
        _
      $region20: #{vae_forward.1} parent=11 // pred_fallthru
        _
      // Predicated region
      $region21: #{vae_forward.1} parent=11 // pred_check
        %p283 = pneg %p131
      $region22: #{vae_forward.1} parent=11 // pred_check_branch
        %285 = sbr.rel (%p283) target = $region24
      $region23: #{vae_forward.1} parent=11 // pred_region
        _
      $region24: #{vae_forward.1} parent=11 // pred_fallthru
        _
      // Predicated region
      $region25: #{vae_forward.1} parent=11 // pred_check
        %p286 = pneg %p152
      $region26: #{vae_forward.1} parent=11 // pred_check_branch
        %288 = sbr.rel (%p286) target = $region28
      $region27: #{vae_forward.1} parent=11 // pred_region
        _
      $region28: #{vae_forward.1} parent=11 // pred_fallthru
        _
      // Predicated region
      $region29: #{vae_forward.1} parent=11 // pred_check
        %p289 = pneg %p173
      $region30: #{vae_forward.1} parent=11 // pred_check_branch
        %291 = sbr.rel (%p289) target = $region32
      $region31: #{vae_forward.1} parent=11 // pred_region
        _
      $region32: #{vae_forward.1} parent=11 // pred_fallthru
        _
      // Predicated region
      $region33: #{vae_forward.1} parent=11 // pred_check
        %p292 = pneg %p194
      $region34: #{vae_forward.1} parent=11 // pred_check_branch
        %294 = sbr.rel (%p292) target = $region36
      $region35: #{vae_forward.1} parent=11 // pred_region
        _
      $region36: #{vae_forward.1} parent=11 // pred_fallthru
        _
      // Predicated region
      $region37: #{vae_forward.1} parent=11 // pred_check
        %p295 = pneg %p215
      $region38: #{vae_forward.1} parent=11 // pred_check_branch
        %297 = sbr.rel (%p295) target = $region40
      $region39: #{vae_forward.1} parent=11 // pred_region
        _
      $region40: #{vae_forward.1} parent=11 // pred_fallthru
        _
      // Predicated region
      $region41: #{vae_forward.1} parent=11 // pred_check
        %p298 = pneg %p236
      $region42: #{vae_forward.1} parent=11 // pred_check_branch
        %300 = sbr.rel (%p298) target = $region44
      $region43: #{vae_forward.1} parent=11 // pred_region
        _
      $region44: #{vae_forward.1} parent=11 // pred_fallthru
        _
    $region12: #{vae_forward.1} parent=5 // pred_fallthru
      _
    %p301 = scmp.lt.s32.totalorder %s16, 2
    // Predicated region
    $region45: #{vae_forward.1} parent=5 // pred_check
      %p302 = pneg %p301
    $region46: #{vae_forward.1} parent=5 // pred_check_branch
      %304 = sbr.rel (%p302) target = $region48
    $region47: #{vae_forward.1} parent=5 // pred_region
      // Predicated region
      $region49: #{vae_forward.1} parent=47 // pred_check
        %p305 = pneg %p36
      $region50: #{vae_forward.1} parent=47 // pred_check_branch
        %307 = sbr.rel (%p305) target = $region52
      $region51: #{vae_forward.1} parent=47 // pred_region
        %s308 = smul.u32 16, %s16
        %p309 = scmp.lt.s32.totalorder %s308, 31
        %s310 = scalar_select %p309, %s308, 31
        %s311 = smul.addr %s310, 4
        %s312 = scalar_lea.vmem %s0, %s311
        %s313 = smul.u32 16, %s16
      $region52: #{vae_forward.1} parent=47 // pred_fallthru
        _
      // Predicated region
      $region53: #{vae_forward.1} parent=47 // pred_check
        %p314 = pneg %p62
      $region54: #{vae_forward.1} parent=47 // pred_check_branch
        %316 = sbr.rel (%p314) target = $region56
      $region55: #{vae_forward.1} parent=47 // pred_region
        %s317 = smul.u32 16, %s16
        %p318 = scmp.lt.s32.totalorder %s317, 31
        %s319 = scalar_select %p318, %s317, 31
        %s320 = smul.addr %s319, 8
        %s321 = scalar_lea.vmem %s1, %s320
        %s322 = smul.u32 16, %s16
      $region56: #{vae_forward.1} parent=47 // pred_fallthru
        _
    $region48: #{vae_forward.1} parent=5 // pred_fallthru
      _
    %p323 = scmp.le.s32.totalorder 1, %s16
    %p324 = scmp.lt.s32.totalorder %s16, 3
    %p325 = pnand %p323, %p324
    %p326 = pneg %p325
    // Predicated region
    $region57: #{vae_forward.1} parent=5 // pred_check
      _
    $region58: #{vae_forward.1} parent=5 // pred_check_branch
      %328 = sbr.rel (%p325) target = $region60
    $region59: #{vae_forward.1} parent=5 // pred_region
      %s329 = ssub.s32 %s16, 1
      %s330 = smul.u32 16, %s21
      %p331 = scmp.lt.s32.totalorder %s330, 31
      %s332 = scalar_select %p331, %s330, 31
      %s333 = smul.addr %s332, 4
      %s334 = scalar_lea.vmem %s0, %s333
      %p335 = pneg %p42
      %p336 = pneg %p39
      %s337 = smul.u32 16, %s21
      %p338 = scmp.lt.s32.totalorder %s337, 31
      %s339 = scalar_select %p338, %s337, 31
      %s340 = smul.addr %s339, 8
      %s341 = scalar_lea.vmem %s1, %s340
      %p342 = pneg %p68
      %p343 = pneg %p65
      %p344 = pneg %p89
      %p345 = pneg %p86
      %p346 = pneg %p110
      %p347 = pneg %p107
      %p348 = pneg %p131
      %p349 = pneg %p128
      %p350 = pneg %p152
      %p351 = pneg %p149
      %p352 = pneg %p173
      %p353 = pneg %p170
      %p354 = pneg %p194
      %p355 = pneg %p191
      %p356 = pneg %p215
      %p357 = pneg %p212
      %p358 = pneg %p236
      %p359 = pneg %p233
      %p360 = pneg %p262
      %p361 = pneg %p259
      %s362 = smul.u32 16, %s21
      %p363 = scmp.lt.s32.totalorder %s362, 31
      %s364 = scalar_select %p363, %s362, 31
      %s365 = smul.addr %s364, 8
      %s366 = scalar_lea.vmem %s10, %s365
      %s367 = smul.u32 16, %s21
      %p368 = scmp.lt.s32.totalorder %s367, 31
      %s369 = scalar_select %p368, %s367, 31
      %s370 = smul.addr %s369, 4
      %s371 = scalar_lea.vmem %s0, %s370
      %s372 = smul.u32 16, %s21
      %s373 = smul.u32 16, %s21
      %p374 = scmp.lt.s32.totalorder %s373, 31
      %s375 = scalar_select %p374, %s373, 31
      %s376 = smul.addr %s375, 8
      %s377 = scalar_lea.vmem %s1, %s376
      %s378 = smul.u32 16, %s21
      %s379 = smul.u32 16, %s21
      %p380 = scmp.lt.s32.totalorder %s379, 31
      %s381 = scalar_select %p380, %s379, 31
      %s382 = smul.addr %s381, 8
      %s383 = scalar_lea.vmem %s10, %s382
      %s384 = smul.u32 16, %s21
      %v386 = vld [vmem:[%s371] sm:$0xf]
      %v387 = vld [vmem:[%s371 + $0x4] sm:$0xf]
      %v388 = vld [vmem:[%s371 + $0x8] sm:$0xf]
      %v389 = vld [vmem:[%s371 + $0xc] sm:$0xf]
      %v390 = vld [vmem:[%s371 + $0x10] sm:$0xf]
      %v391 = vld [vmem:[%s371 + $0x14] sm:$0xf]
      %v392 = vld [vmem:[%s371 + $0x18] sm:$0xf]
      %v393 = vld [vmem:[%s371 + $0x1c] sm:$0xf]
      %v394 = vld [vmem:[%s371 + $0x20] sm:$0xf]
      %v395 = vld [vmem:[%s371 + $0x24] sm:$0xf]
      %v396 = vld [vmem:[%s371 + $0x28] sm:$0xf]
      %v397 = vld [vmem:[%s371 + $0x2c] sm:$0xf]
      %v398 = vld [vmem:[%s371 + $0x30] sm:$0xf]
      %v399 = vld [vmem:[%s371 + $0x34] sm:$0xf]
      %v400 = vld [vmem:[%s371 + $0x38] sm:$0xf]
      %v401 = vld [vmem:[%s371 + $0x3c] sm:$0xf]
      %v402 = vld [vmem:[%s2] sm:$0xff]
      %v403 = vld [vmem:[%s2 + $0x8] sm:$0xff]
      %v404 = vld [vmem:[%s2 + $0x10] sm:$0xff]
      %v405 = vld [vmem:[%s2 + $0x18] sm:$0xff]
      %v406 = vld [vmem:[%s2 + $0x20] sm:$0xff]
      %v407 = vld [vmem:[%s2 + $0x28] sm:$0xff]
      %v408 = vld [vmem:[%s2 + $0x30] sm:$0xff]
      %v409 = vld [vmem:[%s2 + $0x38] sm:$0xff]
      %v410 = vld [vmem:[%s2 + $0x40] sm:$0xff]
      %v411 = vld [vmem:[%s2 + $0x48] sm:$0xff]
      %v412 = vld [vmem:[%s2 + $0x50] sm:$0xff]
      %v413 = vld [vmem:[%s2 + $0x58] sm:$0xff]
      %v414 = vld [vmem:[%s2 + $0x60] sm:$0xff]
      %v415 = vld [vmem:[%s2 + $0x68] sm:$0xff]
      %v416 = vld [vmem:[%s2 + $0x70] sm:$0xff]
      %v417 = vld [vmem:[%s2 + $0x78] sm:$0xff]
      %v418 = vld [vmem:[%s3] sm:$0xf]
      %v420 = vlaneseq
      %v421 = vshrl.u32 %v420, 7
      %v422 = vsub.s32 0, %v421
      %v423 = vrot.slane %v418, %v422
      %v424 = vlaneseq
      %v425 = vshrl.u32 %v424, 7
      %v426 = vsub.s32 1, %v425
      %v427 = vrot.slane %v418, %v426
      %v428 = vlaneseq
      %v429 = vshrl.u32 %v428, 7
      %v430 = vsub.s32 2, %v429
      %v431 = vrot.slane %v418, %v430
      %v432 = vlaneseq
      %v433 = vshrl.u32 %v432, 7
      %v434 = vsub.s32 3, %v433
      %v435 = vrot.slane %v418, %v434
      %v456 = vunpack.c.l.b16 %v386
      %v457 = vunpack.c.l.b16 %v387
      %v458 = vunpack.c.l.b16 %v388
      %v459 = vunpack.c.l.b16 %v389
      %v460 = vunpack.c.l.b16 %v390
      %v461 = vunpack.c.l.b16 %v391
      %v462 = vunpack.c.l.b16 %v392
      %v463 = vunpack.c.l.b16 %v393
      %v464 = vunpack.c.l.b16 %v394
      %v465 = vunpack.c.l.b16 %v395
      %v466 = vunpack.c.l.b16 %v396
      %v467 = vunpack.c.l.b16 %v397
      %v468 = vunpack.c.l.b16 %v398
      %v469 = vunpack.c.l.b16 %v399
      %v470 = vunpack.c.l.b16 %v400
      %v471 = vunpack.c.l.b16 %v401
      %v472 = vpack.c.b16 %v457, %v456
      %v473 = vpack.c.b16 %v459, %v458
      %v474 = vpack.c.b16 %v461, %v460
      %v475 = vpack.c.b16 %v463, %v462
      %v476 = vpack.c.b16 %v465, %v464
      %v477 = vpack.c.b16 %v467, %v466
      %v478 = vpack.c.b16 %v469, %v468
      %v479 = vpack.c.b16 %v471, %v470
      %v496 = vunpack.c.l.b16 %v402
      %v497 = vunpack.c.h.b16 %v402
      %v498 = vunpack.c.l.b16 %v403
      %v499 = vunpack.c.h.b16 %v403
      %v500 = vunpack.c.l.b16 %v404
      %v501 = vunpack.c.h.b16 %v404
      %v502 = vunpack.c.l.b16 %v405
      %v503 = vunpack.c.h.b16 %v405
      %v504 = vunpack.c.l.b16 %v406
      %v505 = vunpack.c.h.b16 %v406
      %v506 = vunpack.c.l.b16 %v407
      %v507 = vunpack.c.h.b16 %v407
      %v508 = vunpack.c.l.b16 %v408
      %v509 = vunpack.c.h.b16 %v408
      %v510 = vunpack.c.l.b16 %v409
      %v511 = vunpack.c.h.b16 %v409
      %v512 = vunpack.c.l.b16 %v410
      %v513 = vunpack.c.h.b16 %v410
      %v514 = vunpack.c.l.b16 %v411
      %v515 = vunpack.c.h.b16 %v411
      %v516 = vunpack.c.l.b16 %v412
      %v517 = vunpack.c.h.b16 %v412
      %v518 = vunpack.c.l.b16 %v413
      %v519 = vunpack.c.h.b16 %v413
      %v520 = vunpack.c.l.b16 %v414
      %v521 = vunpack.c.h.b16 %v414
      %v522 = vunpack.c.l.b16 %v415
      %v523 = vunpack.c.h.b16 %v415
      %v524 = vunpack.c.l.b16 %v416
      %v525 = vunpack.c.h.b16 %v416
      %v526 = vunpack.c.l.b16 %v417
      %v527 = vunpack.c.h.b16 %v417
      %v528 = vpack.c.b16 %v500, %v496
      %v529 = vpack.c.b16 %v501, %v497
      %v530 = vpack.c.b16 %v502, %v498
      %v531 = vpack.c.b16 %v503, %v499
      %v532 = vpack.c.b16 %v508, %v504
      %v533 = vpack.c.b16 %v509, %v505
      %v534 = vpack.c.b16 %v510, %v506
      %v535 = vpack.c.b16 %v511, %v507
      %v536 = vpack.c.b16 %v516, %v512
      %v537 = vpack.c.b16 %v517, %v513
      %v538 = vpack.c.b16 %v518, %v514
      %v539 = vpack.c.b16 %v519, %v515
      %v540 = vpack.c.b16 %v524, %v520
      %v541 = vpack.c.b16 %v525, %v521
      %v542 = vpack.c.b16 %v526, %v522
      %v543 = vpack.c.b16 %v527, %v523
      %vm560 = vcmask 523264
      %v562 = vsel %vm560, %v472, 0
      %v565 = vsel %vm560, %v473, 0
      %v568 = vsel %vm560, %v474, 0
      %v571 = vsel %vm560, %v475, 0
      %v574 = vsel %vm560, %v476, 0
      %v577 = vsel %vm560, %v477, 0
      %v580 = vsel %vm560, %v478, 0
      %v583 = vsel %vm560, %v479, 0
      %585 = vmatprep.subr.bf16.mxu0 0
      %586 = vmatpush1.bf16.msra.mxu0 0
      %587 = vmatprep.subr.bf16.mxu0 0
      %588 = vmatpush1.bf16.msra.mxu0 0
      %589 = vmatprep.subr.bf16.mxu0 0
      %590 = vmatpush1.bf16.msra.mxu0 0
      %591 = vmatprep.subr.bf16.mxu0 0
      %592 = vmatpush1.bf16.msra.mxu0 0
      %593 = vmatprep.subr.bf16.mxu0 %v541
      %594 = vmatpush1.bf16.msra.mxu0 %v540
      %595 = vmatprep.subr.bf16.mxu0 %v537
      %596 = vmatpush1.bf16.msra.mxu0 %v536
      %597 = vmatprep.subr.bf16.mxu0 %v533
      %598 = vmatpush1.bf16.msra.mxu0 %v532
      %599 = vmatprep.subr.bf16.mxu0 %v529
      %600 = vmatpush1.bf16.msra.mxu0 %v528
      %601 = vmatprep.subr.bf16.mxu0 0
      %602 = vmatpush2.bf16.msra.mxu0 0
      %603 = vmatprep.subr.bf16.mxu0 0
      %604 = vmatpush2.bf16.msra.mxu0 0
      %605 = vmatprep.subr.bf16.mxu0 0
      %606 = vmatpush2.bf16.msra.mxu0 0
      %607 = vmatprep.subr.bf16.mxu0 0
      %608 = vmatpush2.bf16.msra.mxu0 0
      %609 = vmatprep.subr.bf16.mxu0 0
      %610 = vmatpush2.bf16.msra.mxu0 0
      %611 = vmatprep.subr.bf16.mxu0 0
      %612 = vmatpush2.bf16.msra.mxu0 0
      %613 = vmatprep.subr.bf16.mxu0 0
      %614 = vmatpush2.bf16.msra.mxu0 0
      %615 = vmatprep.subr.bf16.mxu0 0
      %616 = vmatpush2.bf16.msra.mxu0 0
      %617 = vmatprep.mubr.bf16.mxu0 0
      %618 = vmatmul.mubr.bf16.gmra.mxu0 %v562
      %v619 = vpop.f32.mrf.mxu0
      %v620 = vadd.f32 %v423, %v619
      %v621 = vpop.f32.mrf.mxu0
      %v622 = vadd.f32 %v427, %v621
      %v623 = vpop.f32.mrf.mxu0
      %v624 = vadd.f32 %v423, %v623
      %v625 = vpop.f32.mrf.mxu0
      %v626 = vadd.f32 %v427, %v625
      %627 = vmatprep.mubr.bf16.mxu0 0
      %628 = vmatmul.mubr.bf16.gmra.mxu0 %v565
      %v629 = vpop.f32.mrf.mxu0
      %v630 = vadd.f32 %v423, %v629
      %v631 = vpop.f32.mrf.mxu0
      %v632 = vadd.f32 %v427, %v631
      %v633 = vpop.f32.mrf.mxu0
      %v634 = vadd.f32 %v423, %v633
      %v635 = vpop.f32.mrf.mxu0
      %v636 = vadd.f32 %v427, %v635
      %637 = vmatprep.mubr.bf16.mxu0 0
      %638 = vmatmul.mubr.bf16.gmra.mxu0 %v568
      %v639 = vpop.f32.mrf.mxu0
      %v640 = vadd.f32 %v423, %v639
      %v641 = vpop.f32.mrf.mxu0
      %v642 = vadd.f32 %v427, %v641
      %v643 = vpop.f32.mrf.mxu0
      %v644 = vadd.f32 %v423, %v643
      %v645 = vpop.f32.mrf.mxu0
      %v646 = vadd.f32 %v427, %v645
      %647 = vmatprep.mubr.bf16.mxu0 0
      %648 = vmatmul.mubr.bf16.gmra.mxu0 %v571
      %v649 = vpop.f32.mrf.mxu0
      %v650 = vadd.f32 %v423, %v649
      %v651 = vpop.f32.mrf.mxu0
      %v652 = vadd.f32 %v427, %v651
      %v653 = vpop.f32.mrf.mxu0
      %v654 = vadd.f32 %v423, %v653
      %v655 = vpop.f32.mrf.mxu0
      %v656 = vadd.f32 %v427, %v655
      %657 = vmatprep.mubr.bf16.mxu0 0
      %658 = vmatmul.mubr.bf16.gmra.mxu0 %v574
      %v659 = vpop.f32.mrf.mxu0
      %v660 = vadd.f32 %v423, %v659
      %v661 = vpop.f32.mrf.mxu0
      %v662 = vadd.f32 %v427, %v661
      %v663 = vpop.f32.mrf.mxu0
      %v664 = vadd.f32 %v423, %v663
      %v665 = vpop.f32.mrf.mxu0
      %v666 = vadd.f32 %v427, %v665
      %667 = vmatprep.mubr.bf16.mxu0 0
      %668 = vmatmul.mubr.bf16.gmra.mxu0 %v577
      %v669 = vpop.f32.mrf.mxu0
      %v670 = vadd.f32 %v423, %v669
      %v671 = vpop.f32.mrf.mxu0
      %v672 = vadd.f32 %v427, %v671
      %v673 = vpop.f32.mrf.mxu0
      %v674 = vadd.f32 %v423, %v673
      %v675 = vpop.f32.mrf.mxu0
      %v676 = vadd.f32 %v427, %v675
      %677 = vmatprep.mubr.bf16.mxu0 0
      %678 = vmatmul.mubr.bf16.gmra.mxu0 %v580
      %v679 = vpop.f32.mrf.mxu0
      %v680 = vadd.f32 %v423, %v679
      %v681 = vpop.f32.mrf.mxu0
      %v682 = vadd.f32 %v427, %v681
      %v683 = vpop.f32.mrf.mxu0
      %v684 = vadd.f32 %v423, %v683
      %v685 = vpop.f32.mrf.mxu0
      %v686 = vadd.f32 %v427, %v685
      %687 = vmatprep.mubr.bf16.mxu0 0
      %688 = vmatmul.mubr.bf16.gmra.mxu0 %v583
      %v689 = vpop.f32.mrf.mxu0
      %v690 = vadd.f32 %v423, %v689
      %v691 = vpop.f32.mrf.mxu0
      %v692 = vadd.f32 %v427, %v691
      %v693 = vpop.f32.mrf.mxu0
      %v694 = vadd.f32 %v423, %v693
      %v695 = vpop.f32.mrf.mxu0
      %v696 = vadd.f32 %v427, %v695
      %697 = vdwg.mxu0
      %698 = vmatprep.subr.bf16.mxu0 0
      %699 = vmatpush1.bf16.msra.mxu0 0
      %700 = vmatprep.subr.bf16.mxu0 0
      %701 = vmatpush1.bf16.msra.mxu0 0
      %702 = vmatprep.subr.bf16.mxu0 0
      %703 = vmatpush1.bf16.msra.mxu0 0
      %704 = vmatprep.subr.bf16.mxu0 0
      %705 = vmatpush1.bf16.msra.mxu0 0
      %706 = vmatprep.subr.bf16.mxu0 %v543
      %707 = vmatpush1.bf16.msra.mxu0 %v542
      %708 = vmatprep.subr.bf16.mxu0 %v539
      %709 = vmatpush1.bf16.msra.mxu0 %v538
      %710 = vmatprep.subr.bf16.mxu0 %v535
      %711 = vmatpush1.bf16.msra.mxu0 %v534
      %712 = vmatprep.subr.bf16.mxu0 %v531
      %713 = vmatpush1.bf16.msra.mxu0 %v530
      %714 = vmatprep.subr.bf16.mxu0 0
      %715 = vmatpush2.bf16.msra.mxu0 0
      %716 = vmatprep.subr.bf16.mxu0 0
      %717 = vmatpush2.bf16.msra.mxu0 0
      %718 = vmatprep.subr.bf16.mxu0 0
      %719 = vmatpush2.bf16.msra.mxu0 0
      %720 = vmatprep.subr.bf16.mxu0 0
      %721 = vmatpush2.bf16.msra.mxu0 0
      %722 = vmatprep.subr.bf16.mxu0 0
      %723 = vmatpush2.bf16.msra.mxu0 0
      %724 = vmatprep.subr.bf16.mxu0 0
      %725 = vmatpush2.bf16.msra.mxu0 0
      %726 = vmatprep.subr.bf16.mxu0 0
      %727 = vmatpush2.bf16.msra.mxu0 0
      %728 = vmatprep.subr.bf16.mxu0 0
      %729 = vmatpush2.bf16.msra.mxu0 0
      %730 = vmatprep.mubr.bf16.mxu0 0
      %731 = vmatmul.mubr.bf16.gmra.mxu0 %v562
      %v732 = vpop.f32.mrf.mxu0
      %v733 = vadd.f32 %v431, %v732
      %v734 = vpop.f32.mrf.mxu0
      %v735 = vadd.f32 %v435, %v734
      %v736 = vpop.f32.mrf.mxu0
      %v737 = vadd.f32 %v431, %v736
      %v738 = vpop.f32.mrf.mxu0
      %v739 = vadd.f32 %v435, %v738
      %740 = vmatprep.mubr.bf16.mxu0 0
      %741 = vmatmul.mubr.bf16.gmra.mxu0 %v565
      %v742 = vpop.f32.mrf.mxu0
      %v743 = vadd.f32 %v431, %v742
      %v744 = vpop.f32.mrf.mxu0
      %v745 = vadd.f32 %v435, %v744
      %v746 = vpop.f32.mrf.mxu0
      %v747 = vadd.f32 %v431, %v746
      %v748 = vpop.f32.mrf.mxu0
      %v749 = vadd.f32 %v435, %v748
      %750 = vmatprep.mubr.bf16.mxu0 0
      %751 = vmatmul.mubr.bf16.gmra.mxu0 %v568
      %v752 = vpop.f32.mrf.mxu0
      %v753 = vadd.f32 %v431, %v752
      %v754 = vpop.f32.mrf.mxu0
      %v755 = vadd.f32 %v435, %v754
      %v756 = vpop.f32.mrf.mxu0
      %v757 = vadd.f32 %v431, %v756
      %v758 = vpop.f32.mrf.mxu0
      %v759 = vadd.f32 %v435, %v758
      %760 = vmatprep.mubr.bf16.mxu0 0
      %761 = vmatmul.mubr.bf16.gmra.mxu0 %v571
      %v762 = vpop.f32.mrf.mxu0
      %v763 = vadd.f32 %v431, %v762
      %v764 = vpop.f32.mrf.mxu0
      %v765 = vadd.f32 %v435, %v764
      %v766 = vpop.f32.mrf.mxu0
      %v767 = vadd.f32 %v431, %v766
      %v768 = vpop.f32.mrf.mxu0
      %v769 = vadd.f32 %v435, %v768
      %770 = vmatprep.mubr.bf16.mxu0 0
      %771 = vmatmul.mubr.bf16.gmra.mxu0 %v574
      %v772 = vpop.f32.mrf.mxu0
      %v773 = vadd.f32 %v431, %v772
      %v774 = vpop.f32.mrf.mxu0
      %v775 = vadd.f32 %v435, %v774
      %v776 = vpop.f32.mrf.mxu0
      %v777 = vadd.f32 %v431, %v776
      %v778 = vpop.f32.mrf.mxu0
      %v779 = vadd.f32 %v435, %v778
      %780 = vmatprep.mubr.bf16.mxu0 0
      %781 = vmatmul.mubr.bf16.gmra.mxu0 %v577
      %v782 = vpop.f32.mrf.mxu0
      %v783 = vadd.f32 %v431, %v782
      %v784 = vpop.f32.mrf.mxu0
      %v785 = vadd.f32 %v435, %v784
      %v786 = vpop.f32.mrf.mxu0
      %v787 = vadd.f32 %v431, %v786
      %v788 = vpop.f32.mrf.mxu0
      %v789 = vadd.f32 %v435, %v788
      %790 = vmatprep.mubr.bf16.mxu0 0
      %791 = vmatmul.mubr.bf16.gmra.mxu0 %v580
      %v792 = vpop.f32.mrf.mxu0
      %v793 = vadd.f32 %v431, %v792
      %v794 = vpop.f32.mrf.mxu0
      %v795 = vadd.f32 %v435, %v794
      %v796 = vpop.f32.mrf.mxu0
      %v797 = vadd.f32 %v431, %v796
      %v798 = vpop.f32.mrf.mxu0
      %v799 = vadd.f32 %v435, %v798
      %800 = vmatprep.mubr.bf16.mxu0 0
      %801 = vmatmul.mubr.bf16.gmra.mxu0 %v583
      %v802 = vpop.f32.mrf.mxu0
      %v803 = vadd.f32 %v431, %v802
      %v804 = vpop.f32.mrf.mxu0
      %v805 = vadd.f32 %v435, %v804
      %v806 = vpop.f32.mrf.mxu0
      %v807 = vadd.f32 %v431, %v806
      %v808 = vpop.f32.mrf.mxu0
      %v809 = vadd.f32 %v435, %v808
      %810 = vdwg.mxu0
      %v811 = vmax.f32 %v620, 0.0
      %v812 = vmax.f32 %v622, 0.0
      %v813 = vmax.f32 %v733, 0.0
      %v814 = vmax.f32 %v735, 0.0
      %v815 = vmax.f32 %v624, 0.0
      %v816 = vmax.f32 %v626, 0.0
      %v817 = vmax.f32 %v737, 0.0
      %v818 = vmax.f32 %v739, 0.0
      %v819 = vmax.f32 %v630, 0.0
      %v820 = vmax.f32 %v632, 0.0
      %v821 = vmax.f32 %v743, 0.0
      %v822 = vmax.f32 %v745, 0.0
      %v823 = vmax.f32 %v634, 0.0
      %v824 = vmax.f32 %v636, 0.0
      %v825 = vmax.f32 %v747, 0.0
      %v826 = vmax.f32 %v749, 0.0
      %v827 = vmax.f32 %v640, 0.0
      %v828 = vmax.f32 %v642, 0.0
      %v829 = vmax.f32 %v753, 0.0
      %v830 = vmax.f32 %v755, 0.0
      %v831 = vmax.f32 %v644, 0.0
      %v832 = vmax.f32 %v646, 0.0
      %v833 = vmax.f32 %v757, 0.0
      %v834 = vmax.f32 %v759, 0.0
      %v835 = vmax.f32 %v650, 0.0
      %v836 = vmax.f32 %v652, 0.0
      %v837 = vmax.f32 %v763, 0.0
      %v838 = vmax.f32 %v765, 0.0
      %v839 = vmax.f32 %v654, 0.0
      %v840 = vmax.f32 %v656, 0.0
      %v841 = vmax.f32 %v767, 0.0
      %v842 = vmax.f32 %v769, 0.0
      %v843 = vmax.f32 %v660, 0.0
      %v844 = vmax.f32 %v662, 0.0
      %v845 = vmax.f32 %v773, 0.0
      %v846 = vmax.f32 %v775, 0.0
      %v847 = vmax.f32 %v664, 0.0
      %v848 = vmax.f32 %v666, 0.0
      %v849 = vmax.f32 %v777, 0.0
      %v850 = vmax.f32 %v779, 0.0
      %v851 = vmax.f32 %v670, 0.0
      %v852 = vmax.f32 %v672, 0.0
      %v853 = vmax.f32 %v783, 0.0
      %v854 = vmax.f32 %v785, 0.0
      %v855 = vmax.f32 %v674, 0.0
      %v856 = vmax.f32 %v676, 0.0
      %v857 = vmax.f32 %v787, 0.0
      %v858 = vmax.f32 %v789, 0.0
      %v859 = vmax.f32 %v680, 0.0
      %v860 = vmax.f32 %v682, 0.0
      %v861 = vmax.f32 %v793, 0.0
      %v862 = vmax.f32 %v795, 0.0
      %v863 = vmax.f32 %v684, 0.0
      %v864 = vmax.f32 %v686, 0.0
      %v865 = vmax.f32 %v797, 0.0
      %v866 = vmax.f32 %v799, 0.0
      %v867 = vmax.f32 %v690, 0.0
      %v868 = vmax.f32 %v692, 0.0
      %v869 = vmax.f32 %v803, 0.0
      %v870 = vmax.f32 %v805, 0.0
      %v871 = vmax.f32 %v694, 0.0
      %v872 = vmax.f32 %v696, 0.0
      %v873 = vmax.f32 %v807, 0.0
      %v874 = vmax.f32 %v809, 0.0
      %v875 = vpack.c.bf16 %v815, %v811
      %v876 = vpack.c.bf16 %v816, %v812
      %v877 = vpack.c.bf16 %v817, %v813
      %v878 = vpack.c.bf16 %v818, %v814
      %v879 = vpack.c.bf16 %v823, %v819
      %v880 = vpack.c.bf16 %v824, %v820
      %v881 = vpack.c.bf16 %v825, %v821
      %v882 = vpack.c.bf16 %v826, %v822
      %v883 = vpack.c.bf16 %v831, %v827
      %v884 = vpack.c.bf16 %v832, %v828
      %v885 = vpack.c.bf16 %v833, %v829
      %v886 = vpack.c.bf16 %v834, %v830
      %v887 = vpack.c.bf16 %v839, %v835
      %v888 = vpack.c.bf16 %v840, %v836
      %v889 = vpack.c.bf16 %v841, %v837
      %v890 = vpack.c.bf16 %v842, %v838
      %v891 = vpack.c.bf16 %v847, %v843
      %v892 = vpack.c.bf16 %v848, %v844
      %v893 = vpack.c.bf16 %v849, %v845
      %v894 = vpack.c.bf16 %v850, %v846
      %v895 = vpack.c.bf16 %v855, %v851
      %v896 = vpack.c.bf16 %v856, %v852
      %v897 = vpack.c.bf16 %v857, %v853
      %v898 = vpack.c.bf16 %v858, %v854
      %v899 = vpack.c.bf16 %v863, %v859
      %v900 = vpack.c.bf16 %v864, %v860
      %v901 = vpack.c.bf16 %v865, %v861
      %v902 = vpack.c.bf16 %v866, %v862
      %v903 = vpack.c.bf16 %v871, %v867
      %v904 = vpack.c.bf16 %v872, %v868
      %v905 = vpack.c.bf16 %v873, %v869
      %v906 = vpack.c.bf16 %v874, %v870
      %v907 = vld [vmem:[%s4] sm:$0xf]
      %v908 = vld [vmem:[%s4 + $0x4] sm:$0xf]
      %v909 = vld [vmem:[%s4 + $0x8] sm:$0xf]
      %v910 = vld [vmem:[%s4 + $0xc] sm:$0xf]
      %v911 = vld [vmem:[%s4 + $0x10] sm:$0xf]
      %v912 = vld [vmem:[%s4 + $0x14] sm:$0xf]
      %v913 = vld [vmem:[%s4 + $0x18] sm:$0xf]
      %v914 = vld [vmem:[%s4 + $0x1c] sm:$0xf]
      %v915 = vld [vmem:[%s4 + $0x20] sm:$0xf]
      %v916 = vld [vmem:[%s4 + $0x24] sm:$0xf]
      %v917 = vld [vmem:[%s4 + $0x28] sm:$0xf]
      %v918 = vld [vmem:[%s4 + $0x2c] sm:$0xf]
      %v919 = vld [vmem:[%s4 + $0x30] sm:$0xf]
      %v920 = vld [vmem:[%s4 + $0x34] sm:$0xf]
      %v921 = vld [vmem:[%s4 + $0x38] sm:$0xf]
      %v922 = vld [vmem:[%s4 + $0x3c] sm:$0xf]
      %v923 = vld [vmem:[%s4 + $0x40] sm:$0xf]
      %v924 = vld [vmem:[%s4 + $0x44] sm:$0xf]
      %v925 = vld [vmem:[%s4 + $0x48] sm:$0xf]
      %v926 = vld [vmem:[%s4 + $0x4c] sm:$0xf]
      %v927 = vld [vmem:[%s4 + $0x50] sm:$0xf]
      %v928 = vld [vmem:[%s4 + $0x54] sm:$0xf]
      %v929 = vld [vmem:[%s4 + $0x58] sm:$0xf]
      %v930 = vld [vmem:[%s4 + $0x5c] sm:$0xf]
      %v931 = vld [vmem:[%s4 + $0x60] sm:$0xf]
      %v932 = vld [vmem:[%s4 + $0x64] sm:$0xf]
      %v933 = vld [vmem:[%s4 + $0x68] sm:$0xf]
      %v934 = vld [vmem:[%s4 + $0x6c] sm:$0xf]
      %v935 = vld [vmem:[%s4 + $0x70] sm:$0xf]
      %v936 = vld [vmem:[%s4 + $0x74] sm:$0xf]
      %v937 = vld [vmem:[%s4 + $0x78] sm:$0xf]
      %v938 = vld [vmem:[%s4 + $0x7c] sm:$0xf]
      %v939 = vld [vmem:[%s4 + $0x80] sm:$0xf]
      %v940 = vld [vmem:[%s4 + $0x84] sm:$0xf]
      %v941 = vld [vmem:[%s4 + $0x88] sm:$0xf]
      %v942 = vld [vmem:[%s4 + $0x8c] sm:$0xf]
      %v943 = vld [vmem:[%s4 + $0x90] sm:$0xf]
      %v944 = vld [vmem:[%s4 + $0x94] sm:$0xf]
      %v945 = vld [vmem:[%s4 + $0x98] sm:$0xf]
      %v946 = vld [vmem:[%s4 + $0x9c] sm:$0xf]
      %v947 = vld [vmem:[%s4 + $0xa0] sm:$0xf]
      %v948 = vld [vmem:[%s4 + $0xa4] sm:$0xf]
      %v949 = vld [vmem:[%s4 + $0xa8] sm:$0xf]
      %v950 = vld [vmem:[%s4 + $0xac] sm:$0xf]
      %v951 = vld [vmem:[%s4 + $0xb0] sm:$0xf]
      %v952 = vld [vmem:[%s4 + $0xb4] sm:$0xf]
      %v953 = vld [vmem:[%s4 + $0xb8] sm:$0xf]
      %v954 = vld [vmem:[%s4 + $0xbc] sm:$0xf]
      %v955 = vld [vmem:[%s4 + $0xc0] sm:$0xf]
      %v956 = vld [vmem:[%s4 + $0xc4] sm:$0xf]
      %v957 = vld [vmem:[%s4 + $0xc8] sm:$0xf]
      %v958 = vld [vmem:[%s4 + $0xcc] sm:$0xf]
      %v959 = vld [vmem:[%s4 + $0xd0] sm:$0xf]
      %v960 = vld [vmem:[%s4 + $0xd4] sm:$0xf]
      %v961 = vld [vmem:[%s4 + $0xd8] sm:$0xf]
      %v962 = vld [vmem:[%s4 + $0xdc] sm:$0xf]
      %v963 = vld [vmem:[%s4 + $0xe0] sm:$0xf]
      %v964 = vld [vmem:[%s4 + $0xe4] sm:$0xf]
      %v965 = vld [vmem:[%s4 + $0xe8] sm:$0xf]
      %v966 = vld [vmem:[%s4 + $0xec] sm:$0xf]
      %v967 = vld [vmem:[%s4 + $0xf0] sm:$0xf]
      %v968 = vld [vmem:[%s4 + $0xf4] sm:$0xf]
      %v969 = vld [vmem:[%s4 + $0xf8] sm:$0xf]
      %v970 = vld [vmem:[%s4 + $0xfc] sm:$0xf]
      %v971 = vld [vmem:[%s5] sm:$0x1]
      %v973 = vlaneseq
      %v974 = vshrl.u32 %v973, 7
      %v975 = vsub.s32 0, %v974
      %v976 = vrot.slane %v971, %v975
      %v1042 = vunpack.c.l.b16 %v907
      %v1043 = vunpack.c.l.b16 %v908
      %v1044 = vunpack.c.l.b16 %v909
      %v1045 = vunpack.c.l.b16 %v910
      %v1046 = vunpack.c.l.b16 %v911
      %v1047 = vunpack.c.l.b16 %v912
      %v1048 = vunpack.c.l.b16 %v913
      %v1049 = vunpack.c.l.b16 %v914
      %v1050 = vunpack.c.l.b16 %v915
      %v1051 = vunpack.c.l.b16 %v916
      %v1052 = vunpack.c.l.b16 %v917
      %v1053 = vunpack.c.l.b16 %v918
      %v1054 = vunpack.c.l.b16 %v919
      %v1055 = vunpack.c.l.b16 %v920
      %v1056 = vunpack.c.l.b16 %v921
      %v1057 = vunpack.c.l.b16 %v922
      %v1058 = vunpack.c.l.b16 %v923
      %v1059 = vunpack.c.l.b16 %v924
      %v1060 = vunpack.c.l.b16 %v925
      %v1061 = vunpack.c.l.b16 %v926
      %v1062 = vunpack.c.l.b16 %v927
      %v1063 = vunpack.c.l.b16 %v928
      %v1064 = vunpack.c.l.b16 %v929
      %v1065 = vunpack.c.l.b16 %v930
      %v1066 = vunpack.c.l.b16 %v931
      %v1067 = vunpack.c.l.b16 %v932
      %v1068 = vunpack.c.l.b16 %v933
      %v1069 = vunpack.c.l.b16 %v934
      %v1070 = vunpack.c.l.b16 %v935
      %v1071 = vunpack.c.l.b16 %v936
      %v1072 = vunpack.c.l.b16 %v937
      %v1073 = vunpack.c.l.b16 %v938
      %v1074 = vunpack.c.l.b16 %v939
      %v1075 = vunpack.c.l.b16 %v940
      %v1076 = vunpack.c.l.b16 %v941
      %v1077 = vunpack.c.l.b16 %v942
      %v1078 = vunpack.c.l.b16 %v943
      %v1079 = vunpack.c.l.b16 %v944
      %v1080 = vunpack.c.l.b16 %v945
      %v1081 = vunpack.c.l.b16 %v946
      %v1082 = vunpack.c.l.b16 %v947
      %v1083 = vunpack.c.l.b16 %v948
      %v1084 = vunpack.c.l.b16 %v949
      %v1085 = vunpack.c.l.b16 %v950
      %v1086 = vunpack.c.l.b16 %v951
      %v1087 = vunpack.c.l.b16 %v952
      %v1088 = vunpack.c.l.b16 %v953
      %v1089 = vunpack.c.l.b16 %v954
      %v1090 = vunpack.c.l.b16 %v955
      %v1091 = vunpack.c.l.b16 %v956
      %v1092 = vunpack.c.l.b16 %v957
      %v1093 = vunpack.c.l.b16 %v958
      %v1094 = vunpack.c.l.b16 %v959
      %v1095 = vunpack.c.l.b16 %v960
      %v1096 = vunpack.c.l.b16 %v961
      %v1097 = vunpack.c.l.b16 %v962
      %v1098 = vunpack.c.l.b16 %v963
      %v1099 = vunpack.c.l.b16 %v964
      %v1100 = vunpack.c.l.b16 %v965
      %v1101 = vunpack.c.l.b16 %v966
      %v1102 = vunpack.c.l.b16 %v967
      %v1103 = vunpack.c.l.b16 %v968
      %v1104 = vunpack.c.l.b16 %v969
      %v1105 = vunpack.c.l.b16 %v970
      %v1106 = vpack.c.b16 %v1043, %v1042
      %v1107 = vpack.c.b16 %v1045, %v1044
      %v1108 = vpack.c.b16 %v1047, %v1046
      %v1109 = vpack.c.b16 %v1049, %v1048
      %v1110 = vpack.c.b16 %v1051, %v1050
      %v1111 = vpack.c.b16 %v1053, %v1052
      %v1112 = vpack.c.b16 %v1055, %v1054
      %v1113 = vpack.c.b16 %v1057, %v1056
      %v1114 = vpack.c.b16 %v1059, %v1058
      %v1115 = vpack.c.b16 %v1061, %v1060
      %v1116 = vpack.c.b16 %v1063, %v1062
      %v1117 = vpack.c.b16 %v1065, %v1064
      %v1118 = vpack.c.b16 %v1067, %v1066
      %v1119 = vpack.c.b16 %v1069, %v1068
      %v1120 = vpack.c.b16 %v1071, %v1070
      %v1121 = vpack.c.b16 %v1073, %v1072
      %v1122 = vpack.c.b16 %v1075, %v1074
      %v1123 = vpack.c.b16 %v1077, %v1076
      %v1124 = vpack.c.b16 %v1079, %v1078
      %v1125 = vpack.c.b16 %v1081, %v1080
      %v1126 = vpack.c.b16 %v1083, %v1082
      %v1127 = vpack.c.b16 %v1085, %v1084
      %v1128 = vpack.c.b16 %v1087, %v1086
      %v1129 = vpack.c.b16 %v1089, %v1088
      %v1130 = vpack.c.b16 %v1091, %v1090
      %v1131 = vpack.c.b16 %v1093, %v1092
      %v1132 = vpack.c.b16 %v1095, %v1094
      %v1133 = vpack.c.b16 %v1097, %v1096
      %v1134 = vpack.c.b16 %v1099, %v1098
      %v1135 = vpack.c.b16 %v1101, %v1100
      %v1136 = vpack.c.b16 %v1103, %v1102
      %v1137 = vpack.c.b16 %v1105, %v1104
      %1170 = vmatprep.subr.bf16.mxu0 0
      %1171 = vmatpush1.bf16.msra.mxu0 %v1113
      %1172 = vmatprep.subr.bf16.mxu0 0
      %1173 = vmatpush1.bf16.msra.mxu0 %v1112
      %1174 = vmatprep.subr.bf16.mxu0 0
      %1175 = vmatpush1.bf16.msra.mxu0 %v1111
      %1176 = vmatprep.subr.bf16.mxu0 0
      %1177 = vmatpush1.bf16.msra.mxu0 %v1110
      %1178 = vmatprep.subr.bf16.mxu0 0
      %1179 = vmatpush1.bf16.msra.mxu0 %v1109
      %1180 = vmatprep.subr.bf16.mxu0 0
      %1181 = vmatpush1.bf16.msra.mxu0 %v1108
      %1182 = vmatprep.subr.bf16.mxu0 0
      %1183 = vmatpush1.bf16.msra.mxu0 %v1107
      %1184 = vmatprep.subr.bf16.mxu0 0
      %1185 = vmatpush1.bf16.msra.mxu0 %v1106
      %1186 = vmatprep.subr.bf16.mxu0 0
      %1187 = vmatpush2.bf16.msra.mxu0 %v1121
      %1188 = vmatprep.subr.bf16.mxu0 0
      %1189 = vmatpush2.bf16.msra.mxu0 %v1120
      %1190 = vmatprep.subr.bf16.mxu0 0
      %1191 = vmatpush2.bf16.msra.mxu0 %v1119
      %1192 = vmatprep.subr.bf16.mxu0 0
      %1193 = vmatpush2.bf16.msra.mxu0 %v1118
      %1194 = vmatprep.subr.bf16.mxu0 0
      %1195 = vmatpush2.bf16.msra.mxu0 %v1117
      %1196 = vmatprep.subr.bf16.mxu0 0
      %1197 = vmatpush2.bf16.msra.mxu0 %v1116
      %1198 = vmatprep.subr.bf16.mxu0 0
      %1199 = vmatpush2.bf16.msra.mxu0 %v1115
      %1200 = vmatprep.subr.bf16.mxu0 0
      %1201 = vmatpush2.bf16.msra.mxu0 %v1114
      %1202 = vmatprep.mubr.bf16.mxu0 %v876
      %1203 = vmatmul.mubr.bf16.gmra.mxu0 %v875
      %v1204 = vpop.f32.mrf.mxu0
      %v1205 = vadd.f32 %v976, %v1204
      %v1206 = vpop.f32.mrf.mxu0
      %v1207 = vpop.f32.mrf.mxu0
      %v1208 = vadd.f32 %v976, %v1207
      %v1209 = vpop.f32.mrf.mxu0
      %1210 = vmatprep.mubr.bf16.mxu0 %v880
      %1211 = vmatmul.mubr.bf16.gmra.mxu0 %v879
      %v1212 = vpop.f32.mrf.mxu0
      %v1213 = vadd.f32 %v976, %v1212
      %v1214 = vpop.f32.mrf.mxu0
      %v1215 = vpop.f32.mrf.mxu0
      %v1216 = vadd.f32 %v976, %v1215
      %v1217 = vpop.f32.mrf.mxu0
      %1218 = vmatprep.mubr.bf16.mxu0 %v884
      %1219 = vmatmul.mubr.bf16.gmra.mxu0 %v883
      %v1220 = vpop.f32.mrf.mxu0
      %v1221 = vadd.f32 %v976, %v1220
      %v1222 = vpop.f32.mrf.mxu0
      %v1223 = vpop.f32.mrf.mxu0
      %v1224 = vadd.f32 %v976, %v1223
      %v1225 = vpop.f32.mrf.mxu0
      %1226 = vmatprep.mubr.bf16.mxu0 %v888
      %1227 = vmatmul.mubr.bf16.gmra.mxu0 %v887
      %v1228 = vpop.f32.mrf.mxu0
      %v1229 = vadd.f32 %v976, %v1228
      %v1230 = vpop.f32.mrf.mxu0
      %v1231 = vpop.f32.mrf.mxu0
      %v1232 = vadd.f32 %v976, %v1231
      %v1233 = vpop.f32.mrf.mxu0
      %1234 = vmatprep.mubr.bf16.mxu0 %v892
      %1235 = vmatmul.mubr.bf16.gmra.mxu0 %v891
      %v1236 = vpop.f32.mrf.mxu0
      %v1237 = vadd.f32 %v976, %v1236
      %v1238 = vpop.f32.mrf.mxu0
      %v1239 = vpop.f32.mrf.mxu0
      %v1240 = vadd.f32 %v976, %v1239
      %v1241 = vpop.f32.mrf.mxu0
      %1242 = vmatprep.mubr.bf16.mxu0 %v896
      %1243 = vmatmul.mubr.bf16.gmra.mxu0 %v895
      %v1244 = vpop.f32.mrf.mxu0
      %v1245 = vadd.f32 %v976, %v1244
      %v1246 = vpop.f32.mrf.mxu0
      %v1247 = vpop.f32.mrf.mxu0
      %v1248 = vadd.f32 %v976, %v1247
      %v1249 = vpop.f32.mrf.mxu0
      %1250 = vmatprep.mubr.bf16.mxu0 %v900
      %1251 = vmatmul.mubr.bf16.gmra.mxu0 %v899
      %v1252 = vpop.f32.mrf.mxu0
      %v1253 = vadd.f32 %v976, %v1252
      %v1254 = vpop.f32.mrf.mxu0
      %v1255 = vpop.f32.mrf.mxu0
      %v1256 = vadd.f32 %v976, %v1255
      %v1257 = vpop.f32.mrf.mxu0
      %1258 = vmatprep.mubr.bf16.mxu0 %v904
      %1259 = vmatmul.mubr.bf16.gmra.mxu0 %v903
      %v1260 = vpop.f32.mrf.mxu0
      %v1261 = vadd.f32 %v976, %v1260
      %v1262 = vpop.f32.mrf.mxu0
      %v1263 = vpop.f32.mrf.mxu0
      %v1264 = vadd.f32 %v976, %v1263
      %v1265 = vpop.f32.mrf.mxu0
      %1266 = vdwg.mxu0
      %1267 = vmatprep.subr.bf16.mxu0 0
      %1268 = vmatpush1.bf16.msra.mxu0 %v1129
      %1269 = vmatprep.subr.bf16.mxu0 0
      %1270 = vmatpush1.bf16.msra.mxu0 %v1128
      %1271 = vmatprep.subr.bf16.mxu0 0
      %1272 = vmatpush1.bf16.msra.mxu0 %v1127
      %1273 = vmatprep.subr.bf16.mxu0 0
      %1274 = vmatpush1.bf16.msra.mxu0 %v1126
      %1275 = vmatprep.subr.bf16.mxu0 0
      %1276 = vmatpush1.bf16.msra.mxu0 %v1125
      %1277 = vmatprep.subr.bf16.mxu0 0
      %1278 = vmatpush1.bf16.msra.mxu0 %v1124
      %1279 = vmatprep.subr.bf16.mxu0 0
      %1280 = vmatpush1.bf16.msra.mxu0 %v1123
      %1281 = vmatprep.subr.bf16.mxu0 0
      %1282 = vmatpush1.bf16.msra.mxu0 %v1122
      %1283 = vmatprep.subr.bf16.mxu0 0
      %1284 = vmatpush2.bf16.msra.mxu0 %v1137
      %1285 = vmatprep.subr.bf16.mxu0 0
      %1286 = vmatpush2.bf16.msra.mxu0 %v1136
      %1287 = vmatprep.subr.bf16.mxu0 0
      %1288 = vmatpush2.bf16.msra.mxu0 %v1135
      %1289 = vmatprep.subr.bf16.mxu0 0
      %1290 = vmatpush2.bf16.msra.mxu0 %v1134
      %1291 = vmatprep.subr.bf16.mxu0 0
      %1292 = vmatpush2.bf16.msra.mxu0 %v1133
      %1293 = vmatprep.subr.bf16.mxu0 0
      %1294 = vmatpush2.bf16.msra.mxu0 %v1132
      %1295 = vmatprep.subr.bf16.mxu0 0
      %1296 = vmatpush2.bf16.msra.mxu0 %v1131
      %1297 = vmatprep.subr.bf16.mxu0 0
      %1298 = vmatpush2.bf16.msra.mxu0 %v1130
      %1299 = vmatprep.mubr.bf16.mxu0 %v878
      %1300 = vmatmul.mubr.bf16.gmra.mxu0 %v877
      %v1301 = vpop.f32.mrf.mxu0
      %v1302 = vadd.f32 %v1205, %v1301
      %v1303 = vpop.f32.mrf.mxu0
      %v1304 = vpop.f32.mrf.mxu0
      %v1305 = vadd.f32 %v1208, %v1304
      %v1306 = vpop.f32.mrf.mxu0
      %1307 = vmatprep.mubr.bf16.mxu0 %v882
      %1308 = vmatmul.mubr.bf16.gmra.mxu0 %v881
      %v1309 = vpop.f32.mrf.mxu0
      %v1310 = vadd.f32 %v1213, %v1309
      %v1311 = vpop.f32.mrf.mxu0
      %v1312 = vpop.f32.mrf.mxu0
      %v1313 = vadd.f32 %v1216, %v1312
      %v1314 = vpop.f32.mrf.mxu0
      %1315 = vmatprep.mubr.bf16.mxu0 %v886
      %1316 = vmatmul.mubr.bf16.gmra.mxu0 %v885
      %v1317 = vpop.f32.mrf.mxu0
      %v1318 = vadd.f32 %v1221, %v1317
      %v1319 = vpop.f32.mrf.mxu0
      %v1320 = vpop.f32.mrf.mxu0
      %v1321 = vadd.f32 %v1224, %v1320
      %v1322 = vpop.f32.mrf.mxu0
      %1323 = vmatprep.mubr.bf16.mxu0 %v890
      %1324 = vmatmul.mubr.bf16.gmra.mxu0 %v889
      %v1325 = vpop.f32.mrf.mxu0
      %v1326 = vadd.f32 %v1229, %v1325
      %v1327 = vpop.f32.mrf.mxu0
      %v1328 = vpop.f32.mrf.mxu0
      %v1329 = vadd.f32 %v1232, %v1328
      %v1330 = vpop.f32.mrf.mxu0
      %1331 = vmatprep.mubr.bf16.mxu0 %v894
      %1332 = vmatmul.mubr.bf16.gmra.mxu0 %v893
      %v1333 = vpop.f32.mrf.mxu0
      %v1334 = vadd.f32 %v1237, %v1333
      %v1335 = vpop.f32.mrf.mxu0
      %v1336 = vpop.f32.mrf.mxu0
      %v1337 = vadd.f32 %v1240, %v1336
      %v1338 = vpop.f32.mrf.mxu0
      %1339 = vmatprep.mubr.bf16.mxu0 %v898
      %1340 = vmatmul.mubr.bf16.gmra.mxu0 %v897
      %v1341 = vpop.f32.mrf.mxu0
      %v1342 = vadd.f32 %v1245, %v1341
      %v1343 = vpop.f32.mrf.mxu0
      %v1344 = vpop.f32.mrf.mxu0
      %v1345 = vadd.f32 %v1248, %v1344
      %v1346 = vpop.f32.mrf.mxu0
      %1347 = vmatprep.mubr.bf16.mxu0 %v902
      %1348 = vmatmul.mubr.bf16.gmra.mxu0 %v901
      %v1349 = vpop.f32.mrf.mxu0
      %v1350 = vadd.f32 %v1253, %v1349
      %v1351 = vpop.f32.mrf.mxu0
      %v1352 = vpop.f32.mrf.mxu0
      %v1353 = vadd.f32 %v1256, %v1352
      %v1354 = vpop.f32.mrf.mxu0
      %1355 = vmatprep.mubr.bf16.mxu0 %v906
      %1356 = vmatmul.mubr.bf16.gmra.mxu0 %v905
      %v1357 = vpop.f32.mrf.mxu0
      %v1358 = vadd.f32 %v1261, %v1357
      %v1359 = vpop.f32.mrf.mxu0
      %v1360 = vpop.f32.mrf.mxu0
      %v1361 = vadd.f32 %v1264, %v1360
      %v1362 = vpop.f32.mrf.mxu0
      %1363 = vdwg.mxu0
      %v1364 = vld [vmem:[%s377] sm:$0xff]
      %v1365 = vld [vmem:[%s377 + $0x8] sm:$0xff]
      %v1366 = vld [vmem:[%s377 + $0x10] sm:$0xff]
      %v1367 = vld [vmem:[%s377 + $0x18] sm:$0xff]
      %v1368 = vld [vmem:[%s377 + $0x20] sm:$0xff]
      %v1369 = vld [vmem:[%s377 + $0x28] sm:$0xff]
      %v1370 = vld [vmem:[%s377 + $0x30] sm:$0xff]
      %v1371 = vld [vmem:[%s377 + $0x38] sm:$0xff]
      %v1372 = vld [vmem:[%s377 + $0x40] sm:$0xff]
      %v1373 = vld [vmem:[%s377 + $0x48] sm:$0xff]
      %v1374 = vld [vmem:[%s377 + $0x50] sm:$0xff]
      %v1375 = vld [vmem:[%s377 + $0x58] sm:$0xff]
      %v1376 = vld [vmem:[%s377 + $0x60] sm:$0xff]
      %v1377 = vld [vmem:[%s377 + $0x68] sm:$0xff]
      %v1378 = vld [vmem:[%s377 + $0x70] sm:$0xff]
      %v1379 = vld [vmem:[%s377 + $0x78] sm:$0xff]
      %v1380 = vmul.f32 %v1302, 0.5
      %v1381 = vmul.f32 %v1305, 0.5
      %v1382 = vmul.f32 %v1310, 0.5
      %v1383 = vmul.f32 %v1313, 0.5
      %v1384 = vmul.f32 %v1318, 0.5
      %v1385 = vmul.f32 %v1321, 0.5
      %v1386 = vmul.f32 %v1326, 0.5
      %v1387 = vmul.f32 %v1329, 0.5
      %v1388 = vmul.f32 %v1334, 0.5
      %v1389 = vmul.f32 %v1337, 0.5
      %v1390 = vmul.f32 %v1342, 0.5
      %v1391 = vmul.f32 %v1345, 0.5
      %v1392 = vmul.f32 %v1350, 0.5
      %v1393 = vmul.f32 %v1353, 0.5
      %v1394 = vmul.f32 %v1358, 0.5
      %v1395 = vmul.f32 %v1361, 0.5
      %v1396 = vmul.f32 %v1380, 1.442695
      %v1397 = vpow.pop %v1396
      %v1398 = vmul.f32 %v1381, 1.442695
      %v1399 = vpow.pop %v1398
      %v1400 = vmul.f32 %v1382, 1.442695
      %v1401 = vpow.pop %v1400
      %v1402 = vmul.f32 %v1383, 1.442695
      %v1403 = vpow.pop %v1402
      %v1404 = vmul.f32 %v1384, 1.442695
      %v1405 = vpow.pop %v1404
      %v1406 = vmul.f32 %v1385, 1.442695
      %v1407 = vpow.pop %v1406
      %v1408 = vmul.f32 %v1386, 1.442695
      %v1409 = vpow.pop %v1408
      %v1410 = vmul.f32 %v1387, 1.442695
      %v1411 = vpow.pop %v1410
      %v1412 = vmul.f32 %v1388, 1.442695
      %v1413 = vpow.pop %v1412
      %v1414 = vmul.f32 %v1389, 1.442695
      %v1415 = vpow.pop %v1414
      %v1416 = vmul.f32 %v1390, 1.442695
      %v1417 = vpow.pop %v1416
      %v1418 = vmul.f32 %v1391, 1.442695
      %v1419 = vpow.pop %v1418
      %v1420 = vmul.f32 %v1392, 1.442695
      %v1421 = vpow.pop %v1420
      %v1422 = vmul.f32 %v1393, 1.442695
      %v1423 = vpow.pop %v1422
      %v1424 = vmul.f32 %v1394, 1.442695
      %v1425 = vpow.pop %v1424
      %v1426 = vmul.f32 %v1395, 1.442695
      %v1427 = vpow.pop %v1426
      %1444 = vrot.lane.b32.xlu0 %v1397, 108
      %v1445 = vpop.permute.xlu0 %1444
      %1446 = vrot.lane.b32.xlu0 %v1399, 108
      %v1447 = vpop.permute.xlu0 %1446
      %1448 = vrot.lane.b32.xlu0 %v1401, 108
      %v1449 = vpop.permute.xlu0 %1448
      %1450 = vrot.lane.b32.xlu0 %v1403, 108
      %v1451 = vpop.permute.xlu0 %1450
      %1452 = vrot.lane.b32.xlu0 %v1405, 108
      %v1453 = vpop.permute.xlu0 %1452
      %1454 = vrot.lane.b32.xlu0 %v1407, 108
      %v1455 = vpop.permute.xlu0 %1454
      %1456 = vrot.lane.b32.xlu0 %v1409, 108
      %v1457 = vpop.permute.xlu0 %1456
      %1458 = vrot.lane.b32.xlu0 %v1411, 108
      %v1459 = vpop.permute.xlu0 %1458
      %1460 = vrot.lane.b32.xlu0 %v1413, 108
      %v1461 = vpop.permute.xlu0 %1460
      %1462 = vrot.lane.b32.xlu0 %v1415, 108
      %v1463 = vpop.permute.xlu0 %1462
      %1464 = vrot.lane.b32.xlu0 %v1417, 108
      %v1465 = vpop.permute.xlu0 %1464
      %1466 = vrot.lane.b32.xlu0 %v1419, 108
      %v1467 = vpop.permute.xlu0 %1466
      %1468 = vrot.lane.b32.xlu0 %v1421, 108
      %v1469 = vpop.permute.xlu0 %1468
      %1470 = vrot.lane.b32.xlu0 %v1423, 108
      %v1471 = vpop.permute.xlu0 %1470
      %1472 = vrot.lane.b32.xlu0 %v1425, 108
      %v1473 = vpop.permute.xlu0 %1472
      %1474 = vrot.lane.b32.xlu0 %v1427, 108
      %v1475 = vpop.permute.xlu0 %1474
      %v1492 = vmul.f32 %v1364, %v1445
      %v1493 = vmul.f32 %v1365, %v1447
      %v1494 = vmul.f32 %v1366, %v1449
      %v1495 = vmul.f32 %v1367, %v1451
      %v1496 = vmul.f32 %v1368, %v1453
      %v1497 = vmul.f32 %v1369, %v1455
      %v1498 = vmul.f32 %v1370, %v1457
      %v1499 = vmul.f32 %v1371, %v1459
      %v1500 = vmul.f32 %v1372, %v1461
      %v1501 = vmul.f32 %v1373, %v1463
      %v1502 = vmul.f32 %v1374, %v1465
      %v1503 = vmul.f32 %v1375, %v1467
      %v1504 = vmul.f32 %v1376, %v1469
      %v1505 = vmul.f32 %v1377, %v1471
      %v1506 = vmul.f32 %v1378, %v1473
      %v1507 = vmul.f32 %v1379, %v1475
      %v1508 = vadd.f32 %v1302, %v1492
      %v1509 = vadd.f32 %v1305, %v1493
      %v1510 = vadd.f32 %v1310, %v1494
      %v1511 = vadd.f32 %v1313, %v1495
      %v1512 = vadd.f32 %v1318, %v1496
      %v1513 = vadd.f32 %v1321, %v1497
      %v1514 = vadd.f32 %v1326, %v1498
      %v1515 = vadd.f32 %v1329, %v1499
      %v1516 = vadd.f32 %v1334, %v1500
      %v1517 = vadd.f32 %v1337, %v1501
      %v1518 = vadd.f32 %v1342, %v1502
      %v1519 = vadd.f32 %v1345, %v1503
      %v1520 = vadd.f32 %v1350, %v1504
      %v1521 = vadd.f32 %v1353, %v1505
      %v1522 = vadd.f32 %v1358, %v1506
      %v1523 = vadd.f32 %v1361, %v1507
      %v1524 = vpack.c.bf16 %v1509, %v1508
      %v1525 = vpack.c.bf16 %v1511, %v1510
      %v1526 = vpack.c.bf16 %v1513, %v1512
      %v1527 = vpack.c.bf16 %v1515, %v1514
      %v1528 = vpack.c.bf16 %v1517, %v1516
      %v1529 = vpack.c.bf16 %v1519, %v1518
      %v1530 = vpack.c.bf16 %v1521, %v1520
      %v1531 = vpack.c.bf16 %v1523, %v1522
      %v1532 = vld [vmem:[%s6] sm:$0xff]
      %v1533 = vld [vmem:[%s6 + $0x8] sm:$0xff]
      %v1534 = vld [vmem:[%s6 + $0x10] sm:$0xff]
      %v1535 = vld [vmem:[%s6 + $0x18] sm:$0xff]
      %v1536 = vld [vmem:[%s6 + $0x20] sm:$0x33]
      %v1537 = vld [vmem:[%s6 + $0x28] sm:$0x33]
      %v1538 = vld [vmem:[%s7] sm:$0xf]
      %v1540 = vlaneseq
      %v1541 = vshrl.u32 %v1540, 7
      %v1542 = vsub.s32 0, %v1541
      %v1543 = vrot.slane %v1538, %v1542
      %v1544 = vlaneseq
      %v1545 = vshrl.u32 %v1544, 7
      %v1546 = vsub.s32 1, %v1545
      %v1547 = vrot.slane %v1538, %v1546
      %v1548 = vlaneseq
      %v1549 = vshrl.u32 %v1548, 7
      %v1550 = vsub.s32 2, %v1549
      %v1551 = vrot.slane %v1538, %v1550
      %v1552 = vlaneseq
      %v1553 = vshrl.u32 %v1552, 7
      %v1554 = vsub.s32 3, %v1553
      %v1555 = vrot.slane %v1538, %v1554
      %v1566 = vunpack.c.l.b16 %v1532
      %v1567 = vunpack.c.h.b16 %v1532
      %v1568 = vunpack.c.l.b16 %v1533
      %v1569 = vunpack.c.h.b16 %v1533
      %v1570 = vunpack.c.l.b16 %v1534
      %v1571 = vunpack.c.h.b16 %v1534
      %v1572 = vunpack.c.l.b16 %v1535
      %v1573 = vunpack.c.h.b16 %v1535
      %v1574 = vunpack.c.l.b16 %v1536
      %v1575 = vunpack.c.h.b16 %v1536
      %v1576 = vunpack.c.l.b16 %v1537
      %v1577 = vunpack.c.h.b16 %v1537
      %v1578 = vpack.c.b16 %v1570, %v1566
      %v1579 = vpack.c.b16 %v1571, %v1567
      %v1580 = vpack.c.b16 %v1572, %v1568
      %v1581 = vpack.c.b16 %v1573, %v1569
      %v1582 = vpack.c.b16 %v1574, %v1574
      %v1583 = vpack.c.b16 %v1575, %v1575
      %v1584 = vpack.c.b16 %v1576, %v1576
      %v1585 = vpack.c.b16 %v1577, %v1577
      %vm1590 = vcmask 162816
      %v1592 = vsel %vm1590, %v1524, 0
      %v1595 = vsel %vm1590, %v1525, 0
      %v1598 = vsel %vm1590, %v1526, 0
      %v1601 = vsel %vm1590, %v1527, 0
      %v1604 = vsel %vm1590, %v1528, 0
      %v1607 = vsel %vm1590, %v1529, 0
      %v1610 = vsel %vm1590, %v1530, 0
      %v1613 = vsel %vm1590, %v1531, 0
      %vm1615 = vcmask 1041408
      %v1617 = vsel %vm1615, %v1582, 0
      %v1620 = vsel %vm1615, %v1583, 0
      %v1623 = vsel %vm1615, %v1584, 0
      %v1626 = vsel %vm1615, %v1585, 0
      %1628 = vmatprep.subr.bf16.mxu0 0
      %1629 = vmatpush1.bf16.msra.mxu0 0
      %1630 = vmatprep.subr.bf16.mxu0 0
      %1631 = vmatpush1.bf16.msra.mxu0 0
      %1632 = vmatprep.subr.bf16.mxu0 0
      %1633 = vmatpush1.bf16.msra.mxu0 0
      %1634 = vmatprep.subr.bf16.mxu0 0
      %1635 = vmatpush1.bf16.msra.mxu0 0
      %1636 = vmatprep.subr.bf16.mxu0 0
      %1637 = vmatpush1.bf16.msra.mxu0 0
      %1638 = vmatprep.subr.bf16.mxu0 0
      %1639 = vmatpush1.bf16.msra.mxu0 0
      %1640 = vmatprep.subr.bf16.mxu0 %v1620
      %1641 = vmatpush1.bf16.msra.mxu0 %v1617
      %1642 = vmatprep.subr.bf16.mxu0 %v1579
      %1643 = vmatpush1.bf16.msra.mxu0 %v1578
      %1644 = vmatprep.subr.bf16.mxu0 0
      %1645 = vmatpush2.bf16.msra.mxu0 0
      %1646 = vmatprep.subr.bf16.mxu0 0
      %1647 = vmatpush2.bf16.msra.mxu0 0
      %1648 = vmatprep.subr.bf16.mxu0 0
      %1649 = vmatpush2.bf16.msra.mxu0 0
      %1650 = vmatprep.subr.bf16.mxu0 0
      %1651 = vmatpush2.bf16.msra.mxu0 0
      %1652 = vmatprep.subr.bf16.mxu0 0
      %1653 = vmatpush2.bf16.msra.mxu0 0
      %1654 = vmatprep.subr.bf16.mxu0 0
      %1655 = vmatpush2.bf16.msra.mxu0 0
      %1656 = vmatprep.subr.bf16.mxu0 0
      %1657 = vmatpush2.bf16.msra.mxu0 0
      %1658 = vmatprep.subr.bf16.mxu0 0
      %1659 = vmatpush2.bf16.msra.mxu0 0
      %1660 = vmatprep.mubr.bf16.mxu0 0
      %1661 = vmatmul.mubr.bf16.gmra.mxu0 %v1592
      %v1662 = vpop.f32.mrf.mxu0
      %v1663 = vadd.f32 %v1543, %v1662
      %v1664 = vpop.f32.mrf.mxu0
      %v1665 = vadd.f32 %v1547, %v1664
      %v1666 = vpop.f32.mrf.mxu0
      %v1667 = vadd.f32 %v1543, %v1666
      %v1668 = vpop.f32.mrf.mxu0
      %v1669 = vadd.f32 %v1547, %v1668
      %1670 = vmatprep.mubr.bf16.mxu0 0
      %1671 = vmatmul.mubr.bf16.gmra.mxu0 %v1595
      %v1672 = vpop.f32.mrf.mxu0
      %v1673 = vadd.f32 %v1543, %v1672
      %v1674 = vpop.f32.mrf.mxu0
      %v1675 = vadd.f32 %v1547, %v1674
      %v1676 = vpop.f32.mrf.mxu0
      %v1677 = vadd.f32 %v1543, %v1676
      %v1678 = vpop.f32.mrf.mxu0
      %v1679 = vadd.f32 %v1547, %v1678
      %1680 = vmatprep.mubr.bf16.mxu0 0
      %1681 = vmatmul.mubr.bf16.gmra.mxu0 %v1598
      %v1682 = vpop.f32.mrf.mxu0
      %v1683 = vadd.f32 %v1543, %v1682
      %v1684 = vpop.f32.mrf.mxu0
      %v1685 = vadd.f32 %v1547, %v1684
      %v1686 = vpop.f32.mrf.mxu0
      %v1687 = vadd.f32 %v1543, %v1686
      %v1688 = vpop.f32.mrf.mxu0
      %v1689 = vadd.f32 %v1547, %v1688
      %1690 = vmatprep.mubr.bf16.mxu0 0
      %1691 = vmatmul.mubr.bf16.gmra.mxu0 %v1601
      %v1692 = vpop.f32.mrf.mxu0
      %v1693 = vadd.f32 %v1543, %v1692
      %v1694 = vpop.f32.mrf.mxu0
      %v1695 = vadd.f32 %v1547, %v1694
      %v1696 = vpop.f32.mrf.mxu0
      %v1697 = vadd.f32 %v1543, %v1696
      %v1698 = vpop.f32.mrf.mxu0
      %v1699 = vadd.f32 %v1547, %v1698
      %1700 = vmatprep.mubr.bf16.mxu0 0
      %1701 = vmatmul.mubr.bf16.gmra.mxu0 %v1604
      %v1702 = vpop.f32.mrf.mxu0
      %v1703 = vadd.f32 %v1543, %v1702
      %v1704 = vpop.f32.mrf.mxu0
      %v1705 = vadd.f32 %v1547, %v1704
      %v1706 = vpop.f32.mrf.mxu0
      %v1707 = vadd.f32 %v1543, %v1706
      %v1708 = vpop.f32.mrf.mxu0
      %v1709 = vadd.f32 %v1547, %v1708
      %1710 = vmatprep.mubr.bf16.mxu0 0
      %1711 = vmatmul.mubr.bf16.gmra.mxu0 %v1607
      %v1712 = vpop.f32.mrf.mxu0
      %v1713 = vadd.f32 %v1543, %v1712
      %v1714 = vpop.f32.mrf.mxu0
      %v1715 = vadd.f32 %v1547, %v1714
      %v1716 = vpop.f32.mrf.mxu0
      %v1717 = vadd.f32 %v1543, %v1716
      %v1718 = vpop.f32.mrf.mxu0
      %v1719 = vadd.f32 %v1547, %v1718
      %1720 = vmatprep.mubr.bf16.mxu0 0
      %1721 = vmatmul.mubr.bf16.gmra.mxu0 %v1610
      %v1722 = vpop.f32.mrf.mxu0
      %v1723 = vadd.f32 %v1543, %v1722
      %v1724 = vpop.f32.mrf.mxu0
      %v1725 = vadd.f32 %v1547, %v1724
      %v1726 = vpop.f32.mrf.mxu0
      %v1727 = vadd.f32 %v1543, %v1726
      %v1728 = vpop.f32.mrf.mxu0
      %v1729 = vadd.f32 %v1547, %v1728
      %1730 = vmatprep.mubr.bf16.mxu0 0
      %1731 = vmatmul.mubr.bf16.gmra.mxu0 %v1613
      %v1732 = vpop.f32.mrf.mxu0
      %v1733 = vadd.f32 %v1543, %v1732
      %v1734 = vpop.f32.mrf.mxu0
      %v1735 = vadd.f32 %v1547, %v1734
      %v1736 = vpop.f32.mrf.mxu0
      %v1737 = vadd.f32 %v1543, %v1736
      %v1738 = vpop.f32.mrf.mxu0
      %v1739 = vadd.f32 %v1547, %v1738
      %1740 = vdwg.mxu0
      %1741 = vmatprep.subr.bf16.mxu0 0
      %1742 = vmatpush1.bf16.msra.mxu0 0
      %1743 = vmatprep.subr.bf16.mxu0 0
      %1744 = vmatpush1.bf16.msra.mxu0 0
      %1745 = vmatprep.subr.bf16.mxu0 0
      %1746 = vmatpush1.bf16.msra.mxu0 0
      %1747 = vmatprep.subr.bf16.mxu0 0
      %1748 = vmatpush1.bf16.msra.mxu0 0
      %1749 = vmatprep.subr.bf16.mxu0 0
      %1750 = vmatpush1.bf16.msra.mxu0 0
      %1751 = vmatprep.subr.bf16.mxu0 0
      %1752 = vmatpush1.bf16.msra.mxu0 0
      %1753 = vmatprep.subr.bf16.mxu0 %v1626
      %1754 = vmatpush1.bf16.msra.mxu0 %v1623
      %1755 = vmatprep.subr.bf16.mxu0 %v1581
      %1756 = vmatpush1.bf16.msra.mxu0 %v1580
      %1757 = vmatprep.subr.bf16.mxu0 0
      %1758 = vmatpush2.bf16.msra.mxu0 0
      %1759 = vmatprep.subr.bf16.mxu0 0
      %1760 = vmatpush2.bf16.msra.mxu0 0
      %1761 = vmatprep.subr.bf16.mxu0 0
      %1762 = vmatpush2.bf16.msra.mxu0 0
      %1763 = vmatprep.subr.bf16.mxu0 0
      %1764 = vmatpush2.bf16.msra.mxu0 0
      %1765 = vmatprep.subr.bf16.mxu0 0
      %1766 = vmatpush2.bf16.msra.mxu0 0
      %1767 = vmatprep.subr.bf16.mxu0 0
      %1768 = vmatpush2.bf16.msra.mxu0 0
      %1769 = vmatprep.subr.bf16.mxu0 0
      %1770 = vmatpush2.bf16.msra.mxu0 0
      %1771 = vmatprep.subr.bf16.mxu0 0
      %1772 = vmatpush2.bf16.msra.mxu0 0
      %1773 = vmatprep.mubr.bf16.mxu0 0
      %1774 = vmatmul.mubr.bf16.gmra.mxu0 %v1592
      %v1775 = vpop.f32.mrf.mxu0
      %v1776 = vadd.f32 %v1551, %v1775
      %v1777 = vpop.f32.mrf.mxu0
      %v1778 = vadd.f32 %v1555, %v1777
      %v1779 = vpop.f32.mrf.mxu0
      %v1780 = vadd.f32 %v1551, %v1779
      %v1781 = vpop.f32.mrf.mxu0
      %v1782 = vadd.f32 %v1555, %v1781
      %1783 = vmatprep.mubr.bf16.mxu0 0
      %1784 = vmatmul.mubr.bf16.gmra.mxu0 %v1595
      %v1785 = vpop.f32.mrf.mxu0
      %v1786 = vadd.f32 %v1551, %v1785
      %v1787 = vpop.f32.mrf.mxu0
      %v1788 = vadd.f32 %v1555, %v1787
      %v1789 = vpop.f32.mrf.mxu0
      %v1790 = vadd.f32 %v1551, %v1789
      %v1791 = vpop.f32.mrf.mxu0
      %v1792 = vadd.f32 %v1555, %v1791
      %1793 = vmatprep.mubr.bf16.mxu0 0
      %1794 = vmatmul.mubr.bf16.gmra.mxu0 %v1598
      %v1795 = vpop.f32.mrf.mxu0
      %v1796 = vadd.f32 %v1551, %v1795
      %v1797 = vpop.f32.mrf.mxu0
      %v1798 = vadd.f32 %v1555, %v1797
      %v1799 = vpop.f32.mrf.mxu0
      %v1800 = vadd.f32 %v1551, %v1799
      %v1801 = vpop.f32.mrf.mxu0
      %v1802 = vadd.f32 %v1555, %v1801
      %1803 = vmatprep.mubr.bf16.mxu0 0
      %1804 = vmatmul.mubr.bf16.gmra.mxu0 %v1601
      %v1805 = vpop.f32.mrf.mxu0
      %v1806 = vadd.f32 %v1551, %v1805
      %v1807 = vpop.f32.mrf.mxu0
      %v1808 = vadd.f32 %v1555, %v1807
      %v1809 = vpop.f32.mrf.mxu0
      %v1810 = vadd.f32 %v1551, %v1809
      %v1811 = vpop.f32.mrf.mxu0
      %v1812 = vadd.f32 %v1555, %v1811
      %1813 = vmatprep.mubr.bf16.mxu0 0
      %1814 = vmatmul.mubr.bf16.gmra.mxu0 %v1604
      %v1815 = vpop.f32.mrf.mxu0
      %v1816 = vadd.f32 %v1551, %v1815
      %v1817 = vpop.f32.mrf.mxu0
      %v1818 = vadd.f32 %v1555, %v1817
      %v1819 = vpop.f32.mrf.mxu0
      %v1820 = vadd.f32 %v1551, %v1819
      %v1821 = vpop.f32.mrf.mxu0
      %v1822 = vadd.f32 %v1555, %v1821
      %1823 = vmatprep.mubr.bf16.mxu0 0
      %1824 = vmatmul.mubr.bf16.gmra.mxu0 %v1607
      %v1825 = vpop.f32.mrf.mxu0
      %v1826 = vadd.f32 %v1551, %v1825
      %v1827 = vpop.f32.mrf.mxu0
      %v1828 = vadd.f32 %v1555, %v1827
      %v1829 = vpop.f32.mrf.mxu0
      %v1830 = vadd.f32 %v1551, %v1829
      %v1831 = vpop.f32.mrf.mxu0
      %v1832 = vadd.f32 %v1555, %v1831
      %1833 = vmatprep.mubr.bf16.mxu0 0
      %1834 = vmatmul.mubr.bf16.gmra.mxu0 %v1610
      %v1835 = vpop.f32.mrf.mxu0
      %v1836 = vadd.f32 %v1551, %v1835
      %v1837 = vpop.f32.mrf.mxu0
      %v1838 = vadd.f32 %v1555, %v1837
      %v1839 = vpop.f32.mrf.mxu0
      %v1840 = vadd.f32 %v1551, %v1839
      %v1841 = vpop.f32.mrf.mxu0
      %v1842 = vadd.f32 %v1555, %v1841
      %1843 = vmatprep.mubr.bf16.mxu0 0
      %1844 = vmatmul.mubr.bf16.gmra.mxu0 %v1613
      %v1845 = vpop.f32.mrf.mxu0
      %v1846 = vadd.f32 %v1551, %v1845
      %v1847 = vpop.f32.mrf.mxu0
      %v1848 = vadd.f32 %v1555, %v1847
      %v1849 = vpop.f32.mrf.mxu0
      %v1850 = vadd.f32 %v1551, %v1849
      %v1851 = vpop.f32.mrf.mxu0
      %v1852 = vadd.f32 %v1555, %v1851
      %1853 = vdwg.mxu0
      %v1854 = vmax.f32 %v1663, 0.0
      %v1855 = vmax.f32 %v1665, 0.0
      %v1856 = vmax.f32 %v1776, 0.0
      %v1857 = vmax.f32 %v1778, 0.0
      %v1858 = vmax.f32 %v1667, 0.0
      %v1859 = vmax.f32 %v1669, 0.0
      %v1860 = vmax.f32 %v1780, 0.0
      %v1861 = vmax.f32 %v1782, 0.0
      %v1862 = vmax.f32 %v1673, 0.0
      %v1863 = vmax.f32 %v1675, 0.0
      %v1864 = vmax.f32 %v1786, 0.0
      %v1865 = vmax.f32 %v1788, 0.0
      %v1866 = vmax.f32 %v1677, 0.0
      %v1867 = vmax.f32 %v1679, 0.0
      %v1868 = vmax.f32 %v1790, 0.0
      %v1869 = vmax.f32 %v1792, 0.0
      %v1870 = vmax.f32 %v1683, 0.0
      %v1871 = vmax.f32 %v1685, 0.0
      %v1872 = vmax.f32 %v1796, 0.0
      %v1873 = vmax.f32 %v1798, 0.0
      %v1874 = vmax.f32 %v1687, 0.0
      %v1875 = vmax.f32 %v1689, 0.0
      %v1876 = vmax.f32 %v1800, 0.0
      %v1877 = vmax.f32 %v1802, 0.0
      %v1878 = vmax.f32 %v1693, 0.0
      %v1879 = vmax.f32 %v1695, 0.0
      %v1880 = vmax.f32 %v1806, 0.0
      %v1881 = vmax.f32 %v1808, 0.0
      %v1882 = vmax.f32 %v1697, 0.0
      %v1883 = vmax.f32 %v1699, 0.0
      %v1884 = vmax.f32 %v1810, 0.0
      %v1885 = vmax.f32 %v1812, 0.0
      %v1886 = vmax.f32 %v1703, 0.0
      %v1887 = vmax.f32 %v1705, 0.0
      %v1888 = vmax.f32 %v1816, 0.0
      %v1889 = vmax.f32 %v1818, 0.0
      %v1890 = vmax.f32 %v1707, 0.0
      %v1891 = vmax.f32 %v1709, 0.0
      %v1892 = vmax.f32 %v1820, 0.0
      %v1893 = vmax.f32 %v1822, 0.0
      %v1894 = vmax.f32 %v1713, 0.0
      %v1895 = vmax.f32 %v1715, 0.0
      %v1896 = vmax.f32 %v1826, 0.0
      %v1897 = vmax.f32 %v1828, 0.0
      %v1898 = vmax.f32 %v1717, 0.0
      %v1899 = vmax.f32 %v1719, 0.0
      %v1900 = vmax.f32 %v1830, 0.0
      %v1901 = vmax.f32 %v1832, 0.0
      %v1902 = vmax.f32 %v1723, 0.0
      %v1903 = vmax.f32 %v1725, 0.0
      %v1904 = vmax.f32 %v1836, 0.0
      %v1905 = vmax.f32 %v1838, 0.0
      %v1906 = vmax.f32 %v1727, 0.0
      %v1907 = vmax.f32 %v1729, 0.0
      %v1908 = vmax.f32 %v1840, 0.0
      %v1909 = vmax.f32 %v1842, 0.0
      %v1910 = vmax.f32 %v1733, 0.0
      %v1911 = vmax.f32 %v1735, 0.0
      %v1912 = vmax.f32 %v1846, 0.0
      %v1913 = vmax.f32 %v1848, 0.0
      %v1914 = vmax.f32 %v1737, 0.0
      %v1915 = vmax.f32 %v1739, 0.0
      %v1916 = vmax.f32 %v1850, 0.0
      %v1917 = vmax.f32 %v1852, 0.0
      %v1918 = vpack.c.bf16 %v1858, %v1854
      %v1919 = vpack.c.bf16 %v1859, %v1855
      %v1920 = vpack.c.bf16 %v1860, %v1856
      %v1921 = vpack.c.bf16 %v1861, %v1857
      %v1922 = vpack.c.bf16 %v1866, %v1862
      %v1923 = vpack.c.bf16 %v1867, %v1863
      %v1924 = vpack.c.bf16 %v1868, %v1864
      %v1925 = vpack.c.bf16 %v1869, %v1865
      %v1926 = vpack.c.bf16 %v1874, %v1870
      %v1927 = vpack.c.bf16 %v1875, %v1871
      %v1928 = vpack.c.bf16 %v1876, %v1872
      %v1929 = vpack.c.bf16 %v1877, %v1873
      %v1930 = vpack.c.bf16 %v1882, %v1878
      %v1931 = vpack.c.bf16 %v1883, %v1879
      %v1932 = vpack.c.bf16 %v1884, %v1880
      %v1933 = vpack.c.bf16 %v1885, %v1881
      %v1934 = vpack.c.bf16 %v1890, %v1886
      %v1935 = vpack.c.bf16 %v1891, %v1887
      %v1936 = vpack.c.bf16 %v1892, %v1888
      %v1937 = vpack.c.bf16 %v1893, %v1889
      %v1938 = vpack.c.bf16 %v1898, %v1894
      %v1939 = vpack.c.bf16 %v1899, %v1895
      %v1940 = vpack.c.bf16 %v1900, %v1896
      %v1941 = vpack.c.bf16 %v1901, %v1897
      %v1942 = vpack.c.bf16 %v1906, %v1902
      %v1943 = vpack.c.bf16 %v1907, %v1903
      %v1944 = vpack.c.bf16 %v1908, %v1904
      %v1945 = vpack.c.bf16 %v1909, %v1905
      %v1946 = vpack.c.bf16 %v1914, %v1910
      %v1947 = vpack.c.bf16 %v1915, %v1911
      %v1948 = vpack.c.bf16 %v1916, %v1912
      %v1949 = vpack.c.bf16 %v1917, %v1913
      %v1950 = vld [vmem:[%s8] sm:$0xf]
      %v1951 = vld [vmem:[%s8 + $0x4] sm:$0xf]
      %v1952 = vld [vmem:[%s8 + $0x8] sm:$0xf]
      %v1953 = vld [vmem:[%s8 + $0xc] sm:$0xf]
      %v1954 = vld [vmem:[%s8 + $0x10] sm:$0xf]
      %v1955 = vld [vmem:[%s8 + $0x14] sm:$0xf]
      %v1956 = vld [vmem:[%s8 + $0x18] sm:$0xf]
      %v1957 = vld [vmem:[%s8 + $0x1c] sm:$0xf]
      %v1958 = vld [vmem:[%s8 + $0x20] sm:$0xf]
      %v1959 = vld [vmem:[%s8 + $0x24] sm:$0xf]
      %v1960 = vld [vmem:[%s8 + $0x28] sm:$0xf]
      %v1961 = vld [vmem:[%s8 + $0x2c] sm:$0xf]
      %v1962 = vld [vmem:[%s8 + $0x30] sm:$0xf]
      %v1963 = vld [vmem:[%s8 + $0x34] sm:$0xf]
      %v1964 = vld [vmem:[%s8 + $0x38] sm:$0xf]
      %v1965 = vld [vmem:[%s8 + $0x3c] sm:$0xf]
      %v1966 = vld [vmem:[%s8 + $0x40] sm:$0xf]
      %v1967 = vld [vmem:[%s8 + $0x44] sm:$0xf]
      %v1968 = vld [vmem:[%s8 + $0x48] sm:$0xf]
      %v1969 = vld [vmem:[%s8 + $0x4c] sm:$0xf]
      %v1970 = vld [vmem:[%s8 + $0x50] sm:$0xf]
      %v1971 = vld [vmem:[%s8 + $0x54] sm:$0xf]
      %v1972 = vld [vmem:[%s8 + $0x58] sm:$0xf]
      %v1973 = vld [vmem:[%s8 + $0x5c] sm:$0xf]
      %v1974 = vld [vmem:[%s8 + $0x60] sm:$0xf]
      %v1975 = vld [vmem:[%s8 + $0x64] sm:$0xf]
      %v1976 = vld [vmem:[%s8 + $0x68] sm:$0xf]
      %v1977 = vld [vmem:[%s8 + $0x6c] sm:$0xf]
      %v1978 = vld [vmem:[%s8 + $0x70] sm:$0xf]
      %v1979 = vld [vmem:[%s8 + $0x74] sm:$0xf]
      %v1980 = vld [vmem:[%s8 + $0x78] sm:$0xf]
      %v1981 = vld [vmem:[%s8 + $0x7c] sm:$0xf]
      %v1982 = vld [vmem:[%s8 + $0x80] sm:$0xf]
      %v1983 = vld [vmem:[%s8 + $0x84] sm:$0xf]
      %v1984 = vld [vmem:[%s8 + $0x88] sm:$0xf]
      %v1985 = vld [vmem:[%s8 + $0x8c] sm:$0xf]
      %v1986 = vld [vmem:[%s8 + $0x90] sm:$0xf]
      %v1987 = vld [vmem:[%s8 + $0x94] sm:$0xf]
      %v1988 = vld [vmem:[%s8 + $0x98] sm:$0xf]
      %v1989 = vld [vmem:[%s8 + $0x9c] sm:$0xf]
      %v1990 = vld [vmem:[%s8 + $0xa0] sm:$0xf]
      %v1991 = vld [vmem:[%s8 + $0xa4] sm:$0xf]
      %v1992 = vld [vmem:[%s8 + $0xa8] sm:$0xf]
      %v1993 = vld [vmem:[%s8 + $0xac] sm:$0xf]
      %v1994 = vld [vmem:[%s8 + $0xb0] sm:$0xf]
      %v1995 = vld [vmem:[%s8 + $0xb4] sm:$0xf]
      %v1996 = vld [vmem:[%s8 + $0xb8] sm:$0xf]
      %v1997 = vld [vmem:[%s8 + $0xbc] sm:$0xf]
      %v1998 = vld [vmem:[%s8 + $0xc0] sm:$0xf]
      %v1999 = vld [vmem:[%s8 + $0xc4] sm:$0xf]
      %v2000 = vld [vmem:[%s8 + $0xc8] sm:$0xf]
      %v2001 = vld [vmem:[%s8 + $0xcc] sm:$0xf]
      %v2002 = vld [vmem:[%s8 + $0xd0] sm:$0xf]
      %v2003 = vld [vmem:[%s8 + $0xd4] sm:$0xf]
      %v2004 = vld [vmem:[%s8 + $0xd8] sm:$0xf]
      %v2005 = vld [vmem:[%s8 + $0xdc] sm:$0xf]
      %v2006 = vld [vmem:[%s8 + $0xe0] sm:$0xf]
      %v2007 = vld [vmem:[%s8 + $0xe4] sm:$0xf]
      %v2008 = vld [vmem:[%s8 + $0xe8] sm:$0xf]
      %v2009 = vld [vmem:[%s8 + $0xec] sm:$0xf]
      %v2010 = vld [vmem:[%s8 + $0xf0] sm:$0xf]
      %v2011 = vld [vmem:[%s8 + $0xf4] sm:$0xf]
      %v2012 = vld [vmem:[%s8 + $0xf8] sm:$0xf]
      %v2013 = vld [vmem:[%s8 + $0xfc] sm:$0xf]
      %v2014 = vld [vmem:[%s9] sm:$0x1]
      %v2016 = vlaneseq
      %v2017 = vshrl.u32 %v2016, 7
      %v2018 = vsub.s32 0, %v2017
      %v2019 = vrot.slane %v2014, %v2018
      %v2085 = vunpack.c.l.b16 %v1950
      %v2086 = vunpack.c.l.b16 %v1951
      %v2087 = vunpack.c.l.b16 %v1952
      %v2088 = vunpack.c.l.b16 %v1953
      %v2089 = vunpack.c.l.b16 %v1954
      %v2090 = vunpack.c.l.b16 %v1955
      %v2091 = vunpack.c.l.b16 %v1956
      %v2092 = vunpack.c.l.b16 %v1957
      %v2093 = vunpack.c.l.b16 %v1958
      %v2094 = vunpack.c.l.b16 %v1959
      %v2095 = vunpack.c.l.b16 %v1960
      %v2096 = vunpack.c.l.b16 %v1961
      %v2097 = vunpack.c.l.b16 %v1962
      %v2098 = vunpack.c.l.b16 %v1963
      %v2099 = vunpack.c.l.b16 %v1964
      %v2100 = vunpack.c.l.b16 %v1965
      %v2101 = vunpack.c.l.b16 %v1966
      %v2102 = vunpack.c.l.b16 %v1967
      %v2103 = vunpack.c.l.b16 %v1968
      %v2104 = vunpack.c.l.b16 %v1969
      %v2105 = vunpack.c.l.b16 %v1970
      %v2106 = vunpack.c.l.b16 %v1971
      %v2107 = vunpack.c.l.b16 %v1972
      %v2108 = vunpack.c.l.b16 %v1973
      %v2109 = vunpack.c.l.b16 %v1974
      %v2110 = vunpack.c.l.b16 %v1975
      %v2111 = vunpack.c.l.b16 %v1976
      %v2112 = vunpack.c.l.b16 %v1977
      %v2113 = vunpack.c.l.b16 %v1978
      %v2114 = vunpack.c.l.b16 %v1979
      %v2115 = vunpack.c.l.b16 %v1980
      %v2116 = vunpack.c.l.b16 %v1981
      %v2117 = vunpack.c.l.b16 %v1982
      %v2118 = vunpack.c.l.b16 %v1983
      %v2119 = vunpack.c.l.b16 %v1984
      %v2120 = vunpack.c.l.b16 %v1985
      %v2121 = vunpack.c.l.b16 %v1986
      %v2122 = vunpack.c.l.b16 %v1987
      %v2123 = vunpack.c.l.b16 %v1988
      %v2124 = vunpack.c.l.b16 %v1989
      %v2125 = vunpack.c.l.b16 %v1990
      %v2126 = vunpack.c.l.b16 %v1991
      %v2127 = vunpack.c.l.b16 %v1992
      %v2128 = vunpack.c.l.b16 %v1993
      %v2129 = vunpack.c.l.b16 %v1994
      %v2130 = vunpack.c.l.b16 %v1995
      %v2131 = vunpack.c.l.b16 %v1996
      %v2132 = vunpack.c.l.b16 %v1997
      %v2133 = vunpack.c.l.b16 %v1998
      %v2134 = vunpack.c.l.b16 %v1999
      %v2135 = vunpack.c.l.b16 %v2000
      %v2136 = vunpack.c.l.b16 %v2001
      %v2137 = vunpack.c.l.b16 %v2002
      %v2138 = vunpack.c.l.b16 %v2003
      %v2139 = vunpack.c.l.b16 %v2004
      %v2140 = vunpack.c.l.b16 %v2005
      %v2141 = vunpack.c.l.b16 %v2006
      %v2142 = vunpack.c.l.b16 %v2007
      %v2143 = vunpack.c.l.b16 %v2008
      %v2144 = vunpack.c.l.b16 %v2009
      %v2145 = vunpack.c.l.b16 %v2010
      %v2146 = vunpack.c.l.b16 %v2011
      %v2147 = vunpack.c.l.b16 %v2012
      %v2148 = vunpack.c.l.b16 %v2013
      %v2149 = vpack.c.b16 %v2086, %v2085
      %v2150 = vpack.c.b16 %v2088, %v2087
      %v2151 = vpack.c.b16 %v2090, %v2089
      %v2152 = vpack.c.b16 %v2092, %v2091
      %v2153 = vpack.c.b16 %v2094, %v2093
      %v2154 = vpack.c.b16 %v2096, %v2095
      %v2155 = vpack.c.b16 %v2098, %v2097
      %v2156 = vpack.c.b16 %v2100, %v2099
      %v2157 = vpack.c.b16 %v2102, %v2101
      %v2158 = vpack.c.b16 %v2104, %v2103
      %v2159 = vpack.c.b16 %v2106, %v2105
      %v2160 = vpack.c.b16 %v2108, %v2107
      %v2161 = vpack.c.b16 %v2110, %v2109
      %v2162 = vpack.c.b16 %v2112, %v2111
      %v2163 = vpack.c.b16 %v2114, %v2113
      %v2164 = vpack.c.b16 %v2116, %v2115
      %v2165 = vpack.c.b16 %v2118, %v2117
      %v2166 = vpack.c.b16 %v2120, %v2119
      %v2167 = vpack.c.b16 %v2122, %v2121
      %v2168 = vpack.c.b16 %v2124, %v2123
      %v2169 = vpack.c.b16 %v2126, %v2125
      %v2170 = vpack.c.b16 %v2128, %v2127
      %v2171 = vpack.c.b16 %v2130, %v2129
      %v2172 = vpack.c.b16 %v2132, %v2131
      %v2173 = vpack.c.b16 %v2134, %v2133
      %v2174 = vpack.c.b16 %v2136, %v2135
      %v2175 = vpack.c.b16 %v2138, %v2137
      %v2176 = vpack.c.b16 %v2140, %v2139
      %v2177 = vpack.c.b16 %v2142, %v2141
      %v2178 = vpack.c.b16 %v2144, %v2143
      %v2179 = vpack.c.b16 %v2146, %v2145
      %v2180 = vpack.c.b16 %v2148, %v2147
      %2213 = vmatprep.subr.bf16.mxu0 0
      %2214 = vmatpush1.bf16.msra.mxu0 %v2156
      %2215 = vmatprep.subr.bf16.mxu0 0
      %2216 = vmatpush1.bf16.msra.mxu0 %v2155
      %2217 = vmatprep.subr.bf16.mxu0 0
      %2218 = vmatpush1.bf16.msra.mxu0 %v2154
      %2219 = vmatprep.subr.bf16.mxu0 0
      %2220 = vmatpush1.bf16.msra.mxu0 %v2153
      %2221 = vmatprep.subr.bf16.mxu0 0
      %2222 = vmatpush1.bf16.msra.mxu0 %v2152
      %2223 = vmatprep.subr.bf16.mxu0 0
      %2224 = vmatpush1.bf16.msra.mxu0 %v2151
      %2225 = vmatprep.subr.bf16.mxu0 0
      %2226 = vmatpush1.bf16.msra.mxu0 %v2150
      %2227 = vmatprep.subr.bf16.mxu0 0
      %2228 = vmatpush1.bf16.msra.mxu0 %v2149
      %2229 = vmatprep.subr.bf16.mxu0 0
      %2230 = vmatpush2.bf16.msra.mxu0 %v2164
      %2231 = vmatprep.subr.bf16.mxu0 0
      %2232 = vmatpush2.bf16.msra.mxu0 %v2163
      %2233 = vmatprep.subr.bf16.mxu0 0
      %2234 = vmatpush2.bf16.msra.mxu0 %v2162
      %2235 = vmatprep.subr.bf16.mxu0 0
      %2236 = vmatpush2.bf16.msra.mxu0 %v2161
      %2237 = vmatprep.subr.bf16.mxu0 0
      %2238 = vmatpush2.bf16.msra.mxu0 %v2160
      %2239 = vmatprep.subr.bf16.mxu0 0
      %2240 = vmatpush2.bf16.msra.mxu0 %v2159
      %2241 = vmatprep.subr.bf16.mxu0 0
      %2242 = vmatpush2.bf16.msra.mxu0 %v2158
      %2243 = vmatprep.subr.bf16.mxu0 0
      %2244 = vmatpush2.bf16.msra.mxu0 %v2157
      %2245 = vmatprep.mubr.bf16.mxu0 %v1919
      %2246 = vmatmul.mubr.bf16.gmra.mxu0 %v1918
      %v2247 = vpop.f32.mrf.mxu0
      %v2248 = vadd.f32 %v2019, %v2247
      %v2249 = vpop.f32.mrf.mxu0
      %v2250 = vpop.f32.mrf.mxu0
      %v2251 = vadd.f32 %v2019, %v2250
      %v2252 = vpop.f32.mrf.mxu0
      %2253 = vmatprep.mubr.bf16.mxu0 %v1923
      %2254 = vmatmul.mubr.bf16.gmra.mxu0 %v1922
      %v2255 = vpop.f32.mrf.mxu0
      %v2256 = vadd.f32 %v2019, %v2255
      %v2257 = vpop.f32.mrf.mxu0
      %v2258 = vpop.f32.mrf.mxu0
      %v2259 = vadd.f32 %v2019, %v2258
      %v2260 = vpop.f32.mrf.mxu0
      %2261 = vmatprep.mubr.bf16.mxu0 %v1927
      %2262 = vmatmul.mubr.bf16.gmra.mxu0 %v1926
      %v2263 = vpop.f32.mrf.mxu0
      %v2264 = vadd.f32 %v2019, %v2263
      %v2265 = vpop.f32.mrf.mxu0
      %v2266 = vpop.f32.mrf.mxu0
      %v2267 = vadd.f32 %v2019, %v2266
      %v2268 = vpop.f32.mrf.mxu0
      %2269 = vmatprep.mubr.bf16.mxu0 %v1931
      %2270 = vmatmul.mubr.bf16.gmra.mxu0 %v1930
      %v2271 = vpop.f32.mrf.mxu0
      %v2272 = vadd.f32 %v2019, %v2271
      %v2273 = vpop.f32.mrf.mxu0
      %v2274 = vpop.f32.mrf.mxu0
      %v2275 = vadd.f32 %v2019, %v2274
      %v2276 = vpop.f32.mrf.mxu0
      %2277 = vmatprep.mubr.bf16.mxu0 %v1935
      %2278 = vmatmul.mubr.bf16.gmra.mxu0 %v1934
      %v2279 = vpop.f32.mrf.mxu0
      %v2280 = vadd.f32 %v2019, %v2279
      %v2281 = vpop.f32.mrf.mxu0
      %v2282 = vpop.f32.mrf.mxu0
      %v2283 = vadd.f32 %v2019, %v2282
      %v2284 = vpop.f32.mrf.mxu0
      %2285 = vmatprep.mubr.bf16.mxu0 %v1939
      %2286 = vmatmul.mubr.bf16.gmra.mxu0 %v1938
      %v2287 = vpop.f32.mrf.mxu0
      %v2288 = vadd.f32 %v2019, %v2287
      %v2289 = vpop.f32.mrf.mxu0
      %v2290 = vpop.f32.mrf.mxu0
      %v2291 = vadd.f32 %v2019, %v2290
      %v2292 = vpop.f32.mrf.mxu0
      %2293 = vmatprep.mubr.bf16.mxu0 %v1943
      %2294 = vmatmul.mubr.bf16.gmra.mxu0 %v1942
      %v2295 = vpop.f32.mrf.mxu0
      %v2296 = vadd.f32 %v2019, %v2295
      %v2297 = vpop.f32.mrf.mxu0
      %v2298 = vpop.f32.mrf.mxu0
      %v2299 = vadd.f32 %v2019, %v2298
      %v2300 = vpop.f32.mrf.mxu0
      %2301 = vmatprep.mubr.bf16.mxu0 %v1947
      %2302 = vmatmul.mubr.bf16.gmra.mxu0 %v1946
      %v2303 = vpop.f32.mrf.mxu0
      %v2304 = vadd.f32 %v2019, %v2303
      %v2305 = vpop.f32.mrf.mxu0
      %v2306 = vpop.f32.mrf.mxu0
      %v2307 = vadd.f32 %v2019, %v2306
      %v2308 = vpop.f32.mrf.mxu0
      %2309 = vdwg.mxu0
      %2310 = vmatprep.subr.bf16.mxu0 0
      %2311 = vmatpush1.bf16.msra.mxu0 %v2172
      %2312 = vmatprep.subr.bf16.mxu0 0
      %2313 = vmatpush1.bf16.msra.mxu0 %v2171
      %2314 = vmatprep.subr.bf16.mxu0 0
      %2315 = vmatpush1.bf16.msra.mxu0 %v2170
      %2316 = vmatprep.subr.bf16.mxu0 0
      %2317 = vmatpush1.bf16.msra.mxu0 %v2169
      %2318 = vmatprep.subr.bf16.mxu0 0
      %2319 = vmatpush1.bf16.msra.mxu0 %v2168
      %2320 = vmatprep.subr.bf16.mxu0 0
      %2321 = vmatpush1.bf16.msra.mxu0 %v2167
      %2322 = vmatprep.subr.bf16.mxu0 0
      %2323 = vmatpush1.bf16.msra.mxu0 %v2166
      %2324 = vmatprep.subr.bf16.mxu0 0
      %2325 = vmatpush1.bf16.msra.mxu0 %v2165
      %2326 = vmatprep.subr.bf16.mxu0 0
      %2327 = vmatpush2.bf16.msra.mxu0 %v2180
      %2328 = vmatprep.subr.bf16.mxu0 0
      %2329 = vmatpush2.bf16.msra.mxu0 %v2179
      %2330 = vmatprep.subr.bf16.mxu0 0
      %2331 = vmatpush2.bf16.msra.mxu0 %v2178
      %2332 = vmatprep.subr.bf16.mxu0 0
      %2333 = vmatpush2.bf16.msra.mxu0 %v2177
      %2334 = vmatprep.subr.bf16.mxu0 0
      %2335 = vmatpush2.bf16.msra.mxu0 %v2176
      %2336 = vmatprep.subr.bf16.mxu0 0
      %2337 = vmatpush2.bf16.msra.mxu0 %v2175
      %2338 = vmatprep.subr.bf16.mxu0 0
      %2339 = vmatpush2.bf16.msra.mxu0 %v2174
      %2340 = vmatprep.subr.bf16.mxu0 0
      %2341 = vmatpush2.bf16.msra.mxu0 %v2173
      %2342 = vmatprep.mubr.bf16.mxu0 %v1921
      %2343 = vmatmul.mubr.bf16.gmra.mxu0 %v1920
      %v2344 = vpop.f32.mrf.mxu0
      %v2345 = vadd.f32 %v2248, %v2344
      %v2346 = vpop.f32.mrf.mxu0
      %v2347 = vpop.f32.mrf.mxu0
      %v2348 = vadd.f32 %v2251, %v2347
      %v2349 = vpop.f32.mrf.mxu0
      %2350 = vmatprep.mubr.bf16.mxu0 %v1925
      %2351 = vmatmul.mubr.bf16.gmra.mxu0 %v1924
      %v2352 = vpop.f32.mrf.mxu0
      %v2353 = vadd.f32 %v2256, %v2352
      %v2354 = vpop.f32.mrf.mxu0
      %v2355 = vpop.f32.mrf.mxu0
      %v2356 = vadd.f32 %v2259, %v2355
      %v2357 = vpop.f32.mrf.mxu0
      %2358 = vmatprep.mubr.bf16.mxu0 %v1929
      %2359 = vmatmul.mubr.bf16.gmra.mxu0 %v1928
      %v2360 = vpop.f32.mrf.mxu0
      %v2361 = vadd.f32 %v2264, %v2360
      %v2362 = vpop.f32.mrf.mxu0
      %v2363 = vpop.f32.mrf.mxu0
      %v2364 = vadd.f32 %v2267, %v2363
      %v2365 = vpop.f32.mrf.mxu0
      %2366 = vmatprep.mubr.bf16.mxu0 %v1933
      %2367 = vmatmul.mubr.bf16.gmra.mxu0 %v1932
      %v2368 = vpop.f32.mrf.mxu0
      %v2369 = vadd.f32 %v2272, %v2368
      %v2370 = vpop.f32.mrf.mxu0
      %v2371 = vpop.f32.mrf.mxu0
      %v2372 = vadd.f32 %v2275, %v2371
      %v2373 = vpop.f32.mrf.mxu0
      %2374 = vmatprep.mubr.bf16.mxu0 %v1937
      %2375 = vmatmul.mubr.bf16.gmra.mxu0 %v1936
      %v2376 = vpop.f32.mrf.mxu0
      %v2377 = vadd.f32 %v2280, %v2376
      %v2378 = vpop.f32.mrf.mxu0
      %v2379 = vpop.f32.mrf.mxu0
      %v2380 = vadd.f32 %v2283, %v2379
      %v2381 = vpop.f32.mrf.mxu0
      %2382 = vmatprep.mubr.bf16.mxu0 %v1941
      %2383 = vmatmul.mubr.bf16.gmra.mxu0 %v1940
      %v2384 = vpop.f32.mrf.mxu0
      %v2385 = vadd.f32 %v2288, %v2384
      %v2386 = vpop.f32.mrf.mxu0
      %v2387 = vpop.f32.mrf.mxu0
      %v2388 = vadd.f32 %v2291, %v2387
      %v2389 = vpop.f32.mrf.mxu0
      %2390 = vmatprep.mubr.bf16.mxu0 %v1945
      %2391 = vmatmul.mubr.bf16.gmra.mxu0 %v1944
      %v2392 = vpop.f32.mrf.mxu0
      %v2393 = vadd.f32 %v2296, %v2392
      %v2394 = vpop.f32.mrf.mxu0
      %v2395 = vpop.f32.mrf.mxu0
      %v2396 = vadd.f32 %v2299, %v2395
      %v2397 = vpop.f32.mrf.mxu0
      %2398 = vmatprep.mubr.bf16.mxu0 %v1949
      %2399 = vmatmul.mubr.bf16.gmra.mxu0 %v1948
      %v2400 = vpop.f32.mrf.mxu0
      %v2401 = vadd.f32 %v2304, %v2400
      %v2402 = vpop.f32.mrf.mxu0
      %v2403 = vpop.f32.mrf.mxu0
      %v2404 = vadd.f32 %v2307, %v2403
      %v2405 = vpop.f32.mrf.mxu0
      %2406 = vdwg.mxu0
      %v2407 = vxor.u32 %v2345, 2147483648
      %v2408 = vxor.u32 %v2348, 2147483648
      %v2409 = vxor.u32 %v2353, 2147483648
      %v2410 = vxor.u32 %v2356, 2147483648
      %v2411 = vxor.u32 %v2361, 2147483648
      %v2412 = vxor.u32 %v2364, 2147483648
      %v2413 = vxor.u32 %v2369, 2147483648
      %v2414 = vxor.u32 %v2372, 2147483648
      %v2415 = vxor.u32 %v2377, 2147483648
      %v2416 = vxor.u32 %v2380, 2147483648
      %v2417 = vxor.u32 %v2385, 2147483648
      %v2418 = vxor.u32 %v2388, 2147483648
      %v2419 = vxor.u32 %v2393, 2147483648
      %v2420 = vxor.u32 %v2396, 2147483648
      %v2421 = vxor.u32 %v2401, 2147483648
      %v2422 = vxor.u32 %v2404, 2147483648
      %v2423 = vmul.f32 %v2407, 1.442695
      %v2424 = vpow.pop %v2423
      %v2425 = vmul.f32 %v2408, 1.442695
      %v2426 = vpow.pop %v2425
      %v2427 = vmul.f32 %v2409, 1.442695
      %v2428 = vpow.pop %v2427
      %v2429 = vmul.f32 %v2410, 1.442695
      %v2430 = vpow.pop %v2429
      %v2431 = vmul.f32 %v2411, 1.442695
      %v2432 = vpow.pop %v2431
      %v2433 = vmul.f32 %v2412, 1.442695
      %v2434 = vpow.pop %v2433
      %v2435 = vmul.f32 %v2413, 1.442695
      %v2436 = vpow.pop %v2435
      %v2437 = vmul.f32 %v2414, 1.442695
      %v2438 = vpow.pop %v2437
      %v2439 = vmul.f32 %v2415, 1.442695
      %v2440 = vpow.pop %v2439
      %v2441 = vmul.f32 %v2416, 1.442695
      %v2442 = vpow.pop %v2441
      %v2443 = vmul.f32 %v2417, 1.442695
      %v2444 = vpow.pop %v2443
      %v2445 = vmul.f32 %v2418, 1.442695
      %v2446 = vpow.pop %v2445
      %v2447 = vmul.f32 %v2419, 1.442695
      %v2448 = vpow.pop %v2447
      %v2449 = vmul.f32 %v2420, 1.442695
      %v2450 = vpow.pop %v2449
      %v2451 = vmul.f32 %v2421, 1.442695
      %v2452 = vpow.pop %v2451
      %v2453 = vmul.f32 %v2422, 1.442695
      %v2454 = vpow.pop %v2453
      %v2455 = vadd.f32 %v2424, 1.0
      %v2456 = vadd.f32 %v2426, 1.0
      %v2457 = vadd.f32 %v2428, 1.0
      %v2458 = vadd.f32 %v2430, 1.0
      %v2459 = vadd.f32 %v2432, 1.0
      %v2460 = vadd.f32 %v2434, 1.0
      %v2461 = vadd.f32 %v2436, 1.0
      %v2462 = vadd.f32 %v2438, 1.0
      %v2463 = vadd.f32 %v2440, 1.0
      %v2464 = vadd.f32 %v2442, 1.0
      %v2465 = vadd.f32 %v2444, 1.0
      %v2466 = vadd.f32 %v2446, 1.0
      %v2467 = vadd.f32 %v2448, 1.0
      %v2468 = vadd.f32 %v2450, 1.0
      %v2469 = vadd.f32 %v2452, 1.0
      %v2470 = vadd.f32 %v2454, 1.0
      %v2471 = vrcp.pop %v2455
      %v2472 = vmul.f32 1.0, %v2471
      %v2473 = vrcp.pop %v2456
      %v2474 = vmul.f32 1.0, %v2473
      %v2475 = vrcp.pop %v2457
      %v2476 = vmul.f32 1.0, %v2475
      %v2477 = vrcp.pop %v2458
      %v2478 = vmul.f32 1.0, %v2477
      %v2479 = vrcp.pop %v2459
      %v2480 = vmul.f32 1.0, %v2479
      %v2481 = vrcp.pop %v2460
      %v2482 = vmul.f32 1.0, %v2481
      %v2483 = vrcp.pop %v2461
      %v2484 = vmul.f32 1.0, %v2483
      %v2485 = vrcp.pop %v2462
      %v2486 = vmul.f32 1.0, %v2485
      %v2487 = vrcp.pop %v2463
      %v2488 = vmul.f32 1.0, %v2487
      %v2489 = vrcp.pop %v2464
      %v2490 = vmul.f32 1.0, %v2489
      %v2491 = vrcp.pop %v2465
      %v2492 = vmul.f32 1.0, %v2491
      %v2493 = vrcp.pop %v2466
      %v2494 = vmul.f32 1.0, %v2493
      %v2495 = vrcp.pop %v2467
      %v2496 = vmul.f32 1.0, %v2495
      %v2497 = vrcp.pop %v2468
      %v2498 = vmul.f32 1.0, %v2497
      %v2499 = vrcp.pop %v2469
      %v2500 = vmul.f32 1.0, %v2499
      %v2501 = vrcp.pop %v2470
      %v2502 = vmul.f32 1.0, %v2501
      %2519 = vrot.lane.b32.xlu0 %v1302, 64
      %v2520 = vpop.permute.xlu0 %2519
      %2521 = vrot.lane.b32.xlu0 %v1305, 64
      %v2522 = vpop.permute.xlu0 %2521
      %2523 = vrot.lane.b32.xlu0 %v1310, 64
      %v2524 = vpop.permute.xlu0 %2523
      %2525 = vrot.lane.b32.xlu0 %v1313, 64
      %v2526 = vpop.permute.xlu0 %2525
      %2527 = vrot.lane.b32.xlu0 %v1318, 64
      %v2528 = vpop.permute.xlu0 %2527
      %2529 = vrot.lane.b32.xlu0 %v1321, 64
      %v2530 = vpop.permute.xlu0 %2529
      %2531 = vrot.lane.b32.xlu0 %v1326, 64
      %v2532 = vpop.permute.xlu0 %2531
      %2533 = vrot.lane.b32.xlu0 %v1329, 64
      %v2534 = vpop.permute.xlu0 %2533
      %2535 = vrot.lane.b32.xlu0 %v1334, 64
      %v2536 = vpop.permute.xlu0 %2535
      %2537 = vrot.lane.b32.xlu0 %v1337, 64
      %v2538 = vpop.permute.xlu0 %2537
      %2539 = vrot.lane.b32.xlu0 %v1342, 64
      %v2540 = vpop.permute.xlu0 %2539
      %2541 = vrot.lane.b32.xlu0 %v1345, 64
      %v2542 = vpop.permute.xlu0 %2541
      %2543 = vrot.lane.b32.xlu0 %v1350, 64
      %v2544 = vpop.permute.xlu0 %2543
      %2545 = vrot.lane.b32.xlu0 %v1353, 64
      %v2546 = vpop.permute.xlu0 %2545
      %2547 = vrot.lane.b32.xlu0 %v1358, 64
      %v2548 = vpop.permute.xlu0 %2547
      %2549 = vrot.lane.b32.xlu0 %v1361, 64
      %v2550 = vpop.permute.xlu0 %2549
      %v2567 = vsel %vm560, %v2472, %v2520
      %v2568 = vsel %vm560, %v2474, %v2522
      %v2569 = vsel %vm560, %v2476, %v2524
      %v2570 = vsel %vm560, %v2478, %v2526
      %v2571 = vsel %vm560, %v2480, %v2528
      %v2572 = vsel %vm560, %v2482, %v2530
      %v2573 = vsel %vm560, %v2484, %v2532
      %v2574 = vsel %vm560, %v2486, %v2534
      %v2575 = vsel %vm560, %v2488, %v2536
      %v2576 = vsel %vm560, %v2490, %v2538
      %v2577 = vsel %vm560, %v2492, %v2540
      %v2578 = vsel %vm560, %v2494, %v2542
      %v2579 = vsel %vm560, %v2496, %v2544
      %v2580 = vsel %vm560, %v2498, %v2546
      %v2581 = vsel %vm560, %v2500, %v2548
      %v2582 = vsel %vm560, %v2502, %v2550
      %vm2583 = vcmask 850944
      %v2584 = vsel %vm2583, %v2567, 0.0
      %v2585 = vsel %vm2583, %v2568, 0.0
      %v2586 = vsel %vm2583, %v2569, 0.0
      %v2587 = vsel %vm2583, %v2570, 0.0
      %v2588 = vsel %vm2583, %v2571, 0.0
      %v2589 = vsel %vm2583, %v2572, 0.0
      %v2590 = vsel %vm2583, %v2573, 0.0
      %v2591 = vsel %vm2583, %v2574, 0.0
      %v2592 = vsel %vm2583, %v2575, 0.0
      %v2593 = vsel %vm2583, %v2576, 0.0
      %v2594 = vsel %vm2583, %v2577, 0.0
      %v2595 = vsel %vm2583, %v2578, 0.0
      %v2596 = vsel %vm2583, %v2579, 0.0
      %v2597 = vsel %vm2583, %v2580, 0.0
      %v2598 = vsel %vm2583, %v2581, 0.0
      %v2599 = vsel %vm2583, %v2582, 0.0
      %2600 = vst [vmem:[%s383] sm:$0xff] %v2584
      %2601 = vst [vmem:[%s383 + $0x8] sm:$0xff] %v2585
      %2602 = vst [vmem:[%s383 + $0x10] sm:$0xff] %v2586
      %2603 = vst [vmem:[%s383 + $0x18] sm:$0xff] %v2587
      %2604 = vst [vmem:[%s383 + $0x20] sm:$0xff] %v2588
      %2605 = vst [vmem:[%s383 + $0x28] sm:$0xff] %v2589
      %2606 = vst [vmem:[%s383 + $0x30] sm:$0xff] %v2590
      %2607 = vst [vmem:[%s383 + $0x38] sm:$0xff] %v2591
      %2608 = vst [vmem:[%s383 + $0x40] sm:$0xff] %v2592
      %2609 = vst [vmem:[%s383 + $0x48] sm:$0xff] %v2593
      %2610 = vst [vmem:[%s383 + $0x50] sm:$0xff] %v2594
      %2611 = vst [vmem:[%s383 + $0x58] sm:$0xff] %v2595
      %2612 = vst [vmem:[%s383 + $0x60] sm:$0xff] %v2596
      %2613 = vst [vmem:[%s383 + $0x68] sm:$0xff] %v2597
      %2614 = vst [vmem:[%s383 + $0x70] sm:$0xff] %v2598
      %2615 = vst [vmem:[%s383 + $0x78] sm:$0xff] %v2599
      %s2616 = smul.u32 16, %s21
      %p2617 = scmp.lt.s32.totalorder %s2616, 31
      %s2618 = scalar_select %p2617, %s2616, 31
      %s2619 = smul.addr %s2618, 8
      %s2620 = scalar_lea.vmem %s10, %s2619
      // Predicated region
      $region61: #{vae_forward.1} parent=59 // pred_check
        %p2621 = pneg %p259
      $region62: #{vae_forward.1} parent=59 // pred_check_branch
        %2623 = sbr.rel (%p2621) target = $region64
      $region63: #{vae_forward.1} parent=59 // pred_region
        %s2624 = smul.u32 16, %s21
      $region64: #{vae_forward.1} parent=59 // pred_fallthru
        _
    $region60: #{vae_forward.1} parent=5 // pred_fallthru
      _
    %p2625 = scmp.le.s32.totalorder 2, %s16
    // Predicated region
    $region65: #{vae_forward.1} parent=5 // pred_check
      %p2626 = pneg %p2625
    $region66: #{vae_forward.1} parent=5 // pred_check_branch
      %2628 = sbr.rel (%p2626) target = $region68
    $region67: #{vae_forward.1} parent=5 // pred_region
      %s2629 = ssub.s32 %s16, 2
      // Predicated region
      $region69: #{vae_forward.1} parent=67 // pred_check
        %p2630 = pneg %p265
      $region70: #{vae_forward.1} parent=67 // pred_check_branch
        %2632 = sbr.rel (%p2630) target = $region72
      $region71: #{vae_forward.1} parent=67 // pred_region
        %s2633 = smul.u32 16, %s22
        %p2634 = scmp.lt.s32.totalorder %s2633, 31
        %s2635 = scalar_select %p2634, %s2633, 31
        %s2636 = smul.addr %s2635, 8
        %s2637 = scalar_lea.vmem %s10, %s2636
      $region72: #{vae_forward.1} parent=67 // pred_fallthru
        _
    $region68: #{vae_forward.1} parent=5 // pred_fallthru
      _
  $region6: #{vae_forward.1} parent=0 // loop_footer
    %s20 = sadd.s32 1, %s16
  $region7: #{vae_forward.1} parent=0 // loop_footer_branch
    %15 = sbr.rel target = $region3
  $region8: #{vae_forward.1} parent=0 // loop_exit
    _

</llo_original>
